<compile_context>
chip_gen: v7x
topology: tpu7x:2x2x1
jax: 0.10.0
libtpu: 0.0.40
codegen_flags: <defaults>
</compile_context>

<pallas_src>
import functools

import jax
import jax.numpy as jnp
from jax.experimental import pallas as pl
from jax.experimental.pallas import tpu as pltpu

BN_EPS = 1e-5
# 48 MiB: above v5e's 16 MiB scoped default, safely below v7x's 64 MiB/TC
# physical VMEM (v5e/v6e have 128 MiB physical).
VMEM_LIMIT_BYTES = 48 * 1024 * 1024


def conv_stats_kernel(x_ref, w_ref, mask_ref, y_ref, mean_ref, m2_ref, *,
                      k, w_img, out_len, inv_n):
    """Fused conv + per-image BN partial stats; one batch image per grid step.

    x_ref    : (Cin, FL)        bf16  flattened, tail-padded image (FL >= H*W+k-1)
    w_ref    : (k*k, Cout, Cin) bf16  conv weights, index dd = di*k + dj
    mask_ref : (1, out_len)     f32   1.0 where flat col j < Wo (valid), else 0.0
    y_ref    : (Cout, out_len)  f32   raw conv output (garbage cols j>=Wo kept)
    mean_ref : (Cout, 1)        f32   per-image per-channel mean (valid pixels)
    m2_ref   : (Cout, 1)        f32   per-image sum of squared deviations
    """
    # Conv as k*k shifted-slice matmuls on the MXU (bf16 in, f32 accumulate).
    # out[co, i*W + j] = sum_{di,dj,c} W[co,c,di,dj] * x[c, i*W + j + di*W + dj]
    acc = None
    for di in range(k):
        for dj in range(k):
            off = di * w_img + dj
            xs = x_ref[:, off:off + out_len]              # (Cin, out_len) bf16
            wdd = w_ref[di * k + dj]                      # (Cout, Cin)    bf16
            t = jnp.dot(wdd, xs, preferred_element_type=jnp.float32)
            acc = t if acc is None else acc + t
    y_ref[...] = acc

    # Two-pass per-image statistics (mean, then centered M2) over valid pixels.
    m = mask_ref[...]                                     # (1, out_len)
    mean = jnp.sum(acc * m, axis=-1, keepdims=True) * inv_n
    d = (acc - mean) * m
    mean_ref[...] = mean
    m2_ref[...] = jnp.sum(d * d, axis=-1, keepdims=True)


def bn_relu_kernel(y_ref, scale_ref, shift_ref, o_ref):
    """Apply fused BN affine + ReLU, writing directly in NCHW layout.

    y_ref     : (Cout, Ho, W)  f32  conv output incl. k-1 garbage cols per row
    scale_ref : (Cout, 1, 1)   f32  gamma * rsqrt(var + eps)
    shift_ref : (Cout, 1, 1)   f32  beta - mean * scale
    o_ref     : (Cout, Ho, Wo) f32
    """
    wo = o_ref.shape[-1]
    y = y_ref[:, :, :wo]                                  # drop garbage columns
    o_ref[...] = jnp.maximum(y * scale_ref[...] + shift_ref[...],
                             0.0).astype(o_ref.dtype)


@functools.partial(jax.jit, static_argnames=("kernel_size",))
def conv_layer_forward(x_nchw, weight, bias, gamma, beta, *, kernel_size):
    """ConvLayer(in_ch, out_ch, k, activation='relu', batch_norm=True) forward.

    x_nchw : (N, Cin, H, W); weight : (Cout, Cin, k, k); bias/gamma/beta : (Cout,)
    returns (N, Cout, H-k+1, W-k+1) float32.
    """
    del bias  # exactly cancelled by training-mode BatchNorm (see header notes)
    k = kernel_size
    n, c_in, h, w = x_nchw.shape
    c_out = weight.shape[0]
    ho, wo = h - k + 1, w - k + 1
    out_len = ho * w            # flattened output rows; k-1 garbage cols per row
    n_valid = ho * wo           # true pixel count per image for BN statistics

    # --- glue (XLA, ~1x input bytes): flatten + bf16 cast + tail pad so every
    # shifted slice [off, off+out_len) stays in bounds; no k^2 duplication. ---
    fl = -(-(h * w + k - 1) // 128) * 128
    x_flat = jnp.pad(x_nchw.reshape(n, c_in, h * w).astype(jnp.bfloat16),
                     ((0, 0), (0, 0), (0, fl - h * w)))
    w_r = weight.astype(jnp.bfloat16).transpose(2, 3, 0, 1).reshape(
        k * k, c_out, c_in)
    col = jnp.arange(out_len, dtype=jnp.int32) % w
    mask = (col < wo).astype(jnp.float32).reshape(1, out_len)

    kernel1 = functools.partial(conv_stats_kernel, k=k, w_img=w,
                                out_len=out_len, inv_n=1.0 / n_valid)
    y, mean_i, m2_i = pl.pallas_call(
        kernel1,
        out_shape=(jax.ShapeDtypeStruct((n, c_out, out_len), jnp.float32),
                   jax.ShapeDtypeStruct((n, c_out, 1), jnp.float32),
                   jax.ShapeDtypeStruct((n, c_out, 1), jnp.float32)),
        grid=(n,),
        in_specs=[
            pl.BlockSpec((None, c_in, fl), lambda i: (i, 0, 0)),
            pl.BlockSpec((k * k, c_out, c_in), lambda i: (0, 0, 0)),
            pl.BlockSpec((1, out_len), lambda i: (0, 0)),
        ],
        out_specs=(
            pl.BlockSpec((None, c_out, out_len), lambda i: (i, 0, 0)),
            pl.BlockSpec((None, c_out, 1), lambda i: (i, 0, 0)),
            pl.BlockSpec((None, c_out, 1), lambda i: (i, 0, 0)),
        ),
        compiler_params=pltpu.CompilerParams(
            dimension_semantics=("parallel",),
            vmem_limit_bytes=VMEM_LIMIT_BYTES),
    )(x_flat, w_r, mask)

    # --- tiny O(N*Cout) combine in XLA: Chan's parallel variance (stable) ---
    mean_i = mean_i[:, :, 0]                              # (N, Cout)
    m2_i = m2_i[:, :, 0]                                  # (N, Cout)
    mean = jnp.mean(mean_i, axis=0)                       # (Cout,)
    var = (jnp.sum(m2_i, axis=0)
           + n_valid * jnp.sum(jnp.square(mean_i - mean[None, :]), axis=0)
           ) / (n * n_valid)                              # biased var (PyTorch)
    scale = gamma.astype(jnp.float32) * jax.lax.rsqrt(var + BN_EPS)
    shift = beta.astype(jnp.float32) - mean * scale

    # --- apply pass: reads the small conv tensor once, writes NCHW output ---
    y4 = y.reshape(n, c_out, ho, w)       # free row-major split of the last dim
    out = pl.pallas_call(
        bn_relu_kernel,
        out_shape=jax.ShapeDtypeStruct((n, c_out, ho, wo), jnp.float32),
        grid=(n,),
        in_specs=[
            pl.BlockSpec((None, c_out, ho, w), lambda i: (i, 0, 0, 0)),
            pl.BlockSpec((c_out, 1, 1), lambda i: (0, 0, 0)),
            pl.BlockSpec((c_out, 1, 1), lambda i: (0, 0, 0)),
        ],
        out_specs=pl.BlockSpec((None, c_out, ho, wo), lambda i: (i, 0, 0, 0)),
        compiler_params=pltpu.CompilerParams(
            dimension_semantics=("parallel",),
            vmem_limit_bytes=VMEM_LIMIT_BYTES),
    )(y4, scale.reshape(c_out, 1, 1), shift.reshape(c_out, 1, 1))
    return out


def _reference(x_nchw, weight, bias, gamma, beta):
    """Pure-JAX reference: Conv2d (valid, WITH bias) + training-mode BN + ReLU.

    Uses the same bf16 conv inputs / f32 accumulation as the kernel so the
    comparison isolates kernel correctness from bf16 quantization."""
    out = jax.lax.conv_general_dilated(
        x_nchw.astype(jnp.bfloat16), weight.astype(jnp.bfloat16),
        window_strides=(1, 1), padding="VALID",
        dimension_numbers=("NCHW", "OIHW", "NCHW"),
        preferred_element_type=jnp.float32)
    out = out + bias.reshape(1, -1, 1, 1)      # kept here; training BN cancels it
    mean = jnp.mean(out, axis=(0, 2, 3), keepdims=True)
    var = jnp.mean((out - mean) ** 2, axis=(0, 2, 3), keepdims=True)
    out = (out - mean) * jax.lax.rsqrt(var + BN_EPS)
    out = out * gamma.reshape(1, -1, 1, 1) + beta.reshape(1, -1, 1, 1)
    return jnp.maximum(out, 0.0)


if __name__ == "__main__":
    # ConvLayer(in_channels=4, out_channels=8, kernel_size=3) defaults:
    # stride=1, padding=0, bias=True, batch_norm=True, activation='relu'
    N, C_IN, H, W = 2, 4, 16, 16
    C_OUT, KSIZE = 8, 3

    key = jax.random.PRNGKey(0)
    kx, kw_, kb, kg, kbe = jax.random.split(key, 5)

    x = jax.random.normal(kx, (N, C_IN, H, W), dtype=jnp.float32)
    weight = 0.1 * jax.random.normal(kw_, (C_OUT, C_IN, KSIZE, KSIZE),
                                     dtype=jnp.float32)
    bias = 0.1 * jax.random.normal(kb, (C_OUT,), dtype=jnp.float32)
    gamma = 1.0 + 0.1 * jax.random.normal(kg, (C_OUT,), dtype=jnp.float32)
    beta = 0.1 * jax.random.normal(kbe, (C_OUT,), dtype=jnp.float32)

    out = conv_layer_forward(x, weight, bias, gamma, beta, kernel_size=KSIZE)
    out = jax.block_until_ready(out)

    ref = jax.block_until_ready(_reference(x, weight, bias, gamma, beta))
    assert out.shape == (N, C_OUT, H - KSIZE + 1, W - KSIZE + 1), out.shape
    assert jnp.allclose(out, ref, atol=1e-2, rtol=1e-2), (
        "mismatch vs reference, max abs err = "
        f"{float(jnp.max(jnp.abs(out - ref)))}")

    print("KERNEL_OK")
</pallas_src>

<mosaic_0001>
module attributes {stable_mosaic.version = 11 : i64} {
  func.func @conv_stats_kernel(%arg0: i32, %arg1: memref<1x4x384xbf16, #tpu.memory_space<vmem>>, %arg2: memref<9x8x4xbf16, #tpu.memory_space<vmem>>, %arg3: memref<1x224xf32, #tpu.memory_space<vmem>>, %arg4: memref<1x8x224xf32, #tpu.memory_space<vmem>>, %arg5: memref<1x8x1xf32, #tpu.memory_space<vmem>>, %arg6: memref<1x8x1xf32, #tpu.memory_space<vmem>>) attributes {dimension_semantics = [#tpu.dimension_semantics<parallel>], iteration_bounds = array<i64: 2>, scalar_prefetch = 0 : i64, scratch_operands = 0 : i64, tpu.core_type = #tpu.core_type<tc>, window_params = [{transform_indices = @transform_0, window_bounds = array<i64: 1, 4, 384>}, {pipeline_mode = #tpu.pipeline_mode<synchronous>, transform_indices = @transform_1, window_bounds = array<i64: 9, 8, 4>}, {pipeline_mode = #tpu.pipeline_mode<synchronous>, transform_indices = @transform_2, window_bounds = array<i64: 1, 224>}, {transform_indices = @transform_3, window_bounds = array<i64: 1, 8, 224>}, {transform_indices = @transform_4, window_bounds = array<i64: 1, 8, 1>}, {transform_indices = @transform_5, window_bounds = array<i64: 1, 8, 1>}]} {
    %c0 = arith.constant 0 : index
    %c0_0 = arith.constant 0 : index
    %c0_1 = arith.constant 0 : index
    %0 = vector.load %arg1[%c0, %c0_0, %c0_1] : memref<1x4x384xbf16, #tpu.memory_space<vmem>>, vector<1x4x224xbf16>
    %1 = vector.shape_cast %0 : vector<1x4x224xbf16> to vector<4x224xbf16>
    %c0_2 = arith.constant 0 : index
    %c0_3 = arith.constant 0 : index
    %c0_4 = arith.constant 0 : index
    %2 = vector.load %arg2[%c0_2, %c0_3, %c0_4] : memref<9x8x4xbf16, #tpu.memory_space<vmem>>, vector<1x8x4xbf16>
    %3 = vector.shape_cast %2 : vector<1x8x4xbf16> to vector<8x4xbf16>
    %cst = arith.constant dense<0.000000e+00> : vector<8x224xf32>
    %4 = tpu.matmul %3, %1, %cst {dimension_numbers = #tpu.dot_dimension_numbers<[1], [0], [0], [1], [0, 0, 1, 1], [], []>} : vector<8x4xbf16>, vector<4x224xbf16>, vector<8x224xf32> -> vector<8x224xf32>
    %c0_5 = arith.constant 0 : index
    %c0_6 = arith.constant 0 : index
    %c1 = arith.constant 1 : index
    %5 = vector.load %arg1[%c0_5, %c0_6, %c1] : memref<1x4x384xbf16, #tpu.memory_space<vmem>>, vector<1x4x224xbf16>
    %6 = vector.shape_cast %5 : vector<1x4x224xbf16> to vector<4x224xbf16>
    %c1_7 = arith.constant 1 : index
    %c0_8 = arith.constant 0 : index
    %c0_9 = arith.constant 0 : index
    %7 = vector.load %arg2[%c1_7, %c0_8, %c0_9] : memref<9x8x4xbf16, #tpu.memory_space<vmem>>, vector<1x8x4xbf16>
    %8 = vector.shape_cast %7 : vector<1x8x4xbf16> to vector<8x4xbf16>
    %cst_10 = arith.constant dense<0.000000e+00> : vector<8x224xf32>
    %9 = tpu.matmul %8, %6, %cst_10 {dimension_numbers = #tpu.dot_dimension_numbers<[1], [0], [0], [1], [0, 0, 1, 1], [], []>} : vector<8x4xbf16>, vector<4x224xbf16>, vector<8x224xf32> -> vector<8x224xf32>
    %10 = arith.addf %4, %9 : vector<8x224xf32>
    %c0_11 = arith.constant 0 : index
    %c0_12 = arith.constant 0 : index
    %c2 = arith.constant 2 : index
    %11 = vector.load %arg1[%c0_11, %c0_12, %c2] : memref<1x4x384xbf16, #tpu.memory_space<vmem>>, vector<1x4x224xbf16>
    %12 = vector.shape_cast %11 : vector<1x4x224xbf16> to vector<4x224xbf16>
    %c2_13 = arith.constant 2 : index
    %c0_14 = arith.constant 0 : index
    %c0_15 = arith.constant 0 : index
    %13 = vector.load %arg2[%c2_13, %c0_14, %c0_15] : memref<9x8x4xbf16, #tpu.memory_space<vmem>>, vector<1x8x4xbf16>
    %14 = vector.shape_cast %13 : vector<1x8x4xbf16> to vector<8x4xbf16>
    %cst_16 = arith.constant dense<0.000000e+00> : vector<8x224xf32>
    %15 = tpu.matmul %14, %12, %cst_16 {dimension_numbers = #tpu.dot_dimension_numbers<[1], [0], [0], [1], [0, 0, 1, 1], [], []>} : vector<8x4xbf16>, vector<4x224xbf16>, vector<8x224xf32> -> vector<8x224xf32>
    %16 = arith.addf %10, %15 : vector<8x224xf32>
    %c0_17 = arith.constant 0 : index
    %c0_18 = arith.constant 0 : index
    %c16 = arith.constant 16 : index
    %17 = vector.load %arg1[%c0_17, %c0_18, %c16] : memref<1x4x384xbf16, #tpu.memory_space<vmem>>, vector<1x4x224xbf16>
    %18 = vector.shape_cast %17 : vector<1x4x224xbf16> to vector<4x224xbf16>
    %c3 = arith.constant 3 : index
    %c0_19 = arith.constant 0 : index
    %c0_20 = arith.constant 0 : index
    %19 = vector.load %arg2[%c3, %c0_19, %c0_20] : memref<9x8x4xbf16, #tpu.memory_space<vmem>>, vector<1x8x4xbf16>
    %20 = vector.shape_cast %19 : vector<1x8x4xbf16> to vector<8x4xbf16>
    %cst_21 = arith.constant dense<0.000000e+00> : vector<8x224xf32>
    %21 = tpu.matmul %20, %18, %cst_21 {dimension_numbers = #tpu.dot_dimension_numbers<[1], [0], [0], [1], [0, 0, 1, 1], [], []>} : vector<8x4xbf16>, vector<4x224xbf16>, vector<8x224xf32> -> vector<8x224xf32>
    %22 = arith.addf %16, %21 : vector<8x224xf32>
    %c0_22 = arith.constant 0 : index
    %c0_23 = arith.constant 0 : index
    %c17 = arith.constant 17 : index
    %23 = vector.load %arg1[%c0_22, %c0_23, %c17] : memref<1x4x384xbf16, #tpu.memory_space<vmem>>, vector<1x4x224xbf16>
    %24 = vector.shape_cast %23 : vector<1x4x224xbf16> to vector<4x224xbf16>
    %c4 = arith.constant 4 : index
    %c0_24 = arith.constant 0 : index
    %c0_25 = arith.constant 0 : index
    %25 = vector.load %arg2[%c4, %c0_24, %c0_25] : memref<9x8x4xbf16, #tpu.memory_space<vmem>>, vector<1x8x4xbf16>
    %26 = vector.shape_cast %25 : vector<1x8x4xbf16> to vector<8x4xbf16>
    %cst_26 = arith.constant dense<0.000000e+00> : vector<8x224xf32>
    %27 = tpu.matmul %26, %24, %cst_26 {dimension_numbers = #tpu.dot_dimension_numbers<[1], [0], [0], [1], [0, 0, 1, 1], [], []>} : vector<8x4xbf16>, vector<4x224xbf16>, vector<8x224xf32> -> vector<8x224xf32>
    %28 = arith.addf %22, %27 : vector<8x224xf32>
    %c0_27 = arith.constant 0 : index
    %c0_28 = arith.constant 0 : index
    %c18 = arith.constant 18 : index
    %29 = vector.load %arg1[%c0_27, %c0_28, %c18] : memref<1x4x384xbf16, #tpu.memory_space<vmem>>, vector<1x4x224xbf16>
    %30 = vector.shape_cast %29 : vector<1x4x224xbf16> to vector<4x224xbf16>
    %c5 = arith.constant 5 : index
    %c0_29 = arith.constant 0 : index
    %c0_30 = arith.constant 0 : index
    %31 = vector.load %arg2[%c5, %c0_29, %c0_30] : memref<9x8x4xbf16, #tpu.memory_space<vmem>>, vector<1x8x4xbf16>
    %32 = vector.shape_cast %31 : vector<1x8x4xbf16> to vector<8x4xbf16>
    %cst_31 = arith.constant dense<0.000000e+00> : vector<8x224xf32>
    %33 = tpu.matmul %32, %30, %cst_31 {dimension_numbers = #tpu.dot_dimension_numbers<[1], [0], [0], [1], [0, 0, 1, 1], [], []>} : vector<8x4xbf16>, vector<4x224xbf16>, vector<8x224xf32> -> vector<8x224xf32>
    %34 = arith.addf %28, %33 : vector<8x224xf32>
    %c0_32 = arith.constant 0 : index
    %c0_33 = arith.constant 0 : index
    %c32 = arith.constant 32 : index
    %35 = vector.load %arg1[%c0_32, %c0_33, %c32] : memref<1x4x384xbf16, #tpu.memory_space<vmem>>, vector<1x4x224xbf16>
    %36 = vector.shape_cast %35 : vector<1x4x224xbf16> to vector<4x224xbf16>
    %c6 = arith.constant 6 : index
    %c0_34 = arith.constant 0 : index
    %c0_35 = arith.constant 0 : index
    %37 = vector.load %arg2[%c6, %c0_34, %c0_35] : memref<9x8x4xbf16, #tpu.memory_space<vmem>>, vector<1x8x4xbf16>
    %38 = vector.shape_cast %37 : vector<1x8x4xbf16> to vector<8x4xbf16>
    %cst_36 = arith.constant dense<0.000000e+00> : vector<8x224xf32>
    %39 = tpu.matmul %38, %36, %cst_36 {dimension_numbers = #tpu.dot_dimension_numbers<[1], [0], [0], [1], [0, 0, 1, 1], [], []>} : vector<8x4xbf16>, vector<4x224xbf16>, vector<8x224xf32> -> vector<8x224xf32>
    %40 = arith.addf %34, %39 : vector<8x224xf32>
    %c0_37 = arith.constant 0 : index
    %c0_38 = arith.constant 0 : index
    %c33 = arith.constant 33 : index
    %41 = vector.load %arg1[%c0_37, %c0_38, %c33] : memref<1x4x384xbf16, #tpu.memory_space<vmem>>, vector<1x4x224xbf16>
    %42 = vector.shape_cast %41 : vector<1x4x224xbf16> to vector<4x224xbf16>
    %c7 = arith.constant 7 : index
    %c0_39 = arith.constant 0 : index
    %c0_40 = arith.constant 0 : index
    %43 = vector.load %arg2[%c7, %c0_39, %c0_40] : memref<9x8x4xbf16, #tpu.memory_space<vmem>>, vector<1x8x4xbf16>
    %44 = vector.shape_cast %43 : vector<1x8x4xbf16> to vector<8x4xbf16>
    %cst_41 = arith.constant dense<0.000000e+00> : vector<8x224xf32>
    %45 = tpu.matmul %44, %42, %cst_41 {dimension_numbers = #tpu.dot_dimension_numbers<[1], [0], [0], [1], [0, 0, 1, 1], [], []>} : vector<8x4xbf16>, vector<4x224xbf16>, vector<8x224xf32> -> vector<8x224xf32>
    %46 = arith.addf %40, %45 : vector<8x224xf32>
    %c0_42 = arith.constant 0 : index
    %c0_43 = arith.constant 0 : index
    %c34 = arith.constant 34 : index
    %47 = vector.load %arg1[%c0_42, %c0_43, %c34] : memref<1x4x384xbf16, #tpu.memory_space<vmem>>, vector<1x4x224xbf16>
    %48 = vector.shape_cast %47 : vector<1x4x224xbf16> to vector<4x224xbf16>
    %c8 = arith.constant 8 : index
    %c0_44 = arith.constant 0 : index
    %c0_45 = arith.constant 0 : index
    %49 = vector.load %arg2[%c8, %c0_44, %c0_45] : memref<9x8x4xbf16, #tpu.memory_space<vmem>>, vector<1x8x4xbf16>
    %50 = vector.shape_cast %49 : vector<1x8x4xbf16> to vector<8x4xbf16>
    %cst_46 = arith.constant dense<0.000000e+00> : vector<8x224xf32>
    %51 = tpu.matmul %50, %48, %cst_46 {dimension_numbers = #tpu.dot_dimension_numbers<[1], [0], [0], [1], [0, 0, 1, 1], [], []>} : vector<8x4xbf16>, vector<4x224xbf16>, vector<8x224xf32> -> vector<8x224xf32>
    %52 = arith.addf %46, %51 : vector<8x224xf32>
    %c0_47 = arith.constant 0 : index
    %c0_48 = arith.constant 0 : index
    %c0_49 = arith.constant 0 : index
    %53 = vector.load %arg4[%c0_47, %c0_48, %c0_49] : memref<1x8x224xf32, #tpu.memory_space<vmem>>, vector<1x8x224xf32>
    %54 = vector.shape_cast %53 : vector<1x8x224xf32> to vector<8x224xf32>
    %55 = vector.shape_cast %52 : vector<8x224xf32> to vector<1x8x224xf32>
    tpu.vector_store %arg4[%c0_47, %c0_48, %c0_49], %55 {strides = array<i32>} : memref<1x8x224xf32, #tpu.memory_space<vmem>>, vector<1x8x224xf32>,
    %c0_50 = arith.constant 0 : index
    %c0_51 = arith.constant 0 : index
    %56 = vector.load %arg3[%c0_50, %c0_51] : memref<1x224xf32, #tpu.memory_space<vmem>>, vector<1x224xf32>
    %57 = vector.broadcast %56 : vector<1x224xf32> to vector<8x224xf32>
    %58 = arith.mulf %52, %57 : vector<8x224xf32>
    %cst_52 = arith.constant dense<0.000000e+00> : vector<8xf32>
    %59 = vector.multi_reduction <add>, %58, %cst_52 [1] : vector<8x224xf32> to vector<8xf32>
    %60 = vector.shape_cast %59 : vector<8xf32> to vector<8x1xf32>
    %cst_53 = arith.constant 0.00510204071 : f32
    %61 = vector.broadcast %cst_53 : f32 to vector<8x1xf32>
    %62 = arith.mulf %60, %61 : vector<8x1xf32>
    %63 = vector.broadcast %62 : vector<8x1xf32> to vector<8x224xf32>
    %64 = arith.subf %52, %63 : vector<8x224xf32>
    %65 = vector.broadcast %56 : vector<1x224xf32> to vector<8x224xf32>
    %66 = arith.mulf %64, %65 : vector<8x224xf32>
    %c0_54 = arith.constant 0 : index
    %c0_55 = arith.constant 0 : index
    %c0_56 = arith.constant 0 : index
    %67 = vector.load %arg5[%c0_54, %c0_55, %c0_56] : memref<1x8x1xf32, #tpu.memory_space<vmem>>, vector<1x8x1xf32>
    %68 = vector.shape_cast %67 : vector<1x8x1xf32> to vector<8x1xf32>
    %69 = vector.shape_cast %62 : vector<8x1xf32> to vector<1x8x1xf32>
    tpu.vector_store %arg5[%c0_54, %c0_55, %c0_56], %69 {strides = array<i32>} : memref<1x8x1xf32, #tpu.memory_space<vmem>>, vector<1x8x1xf32>,
    %70 = arith.mulf %66, %66 : vector<8x224xf32>
    %cst_57 = arith.constant dense<0.000000e+00> : vector<8xf32>
    %71 = vector.multi_reduction <add>, %70, %cst_57 [1] : vector<8x224xf32> to vector<8xf32>
    %72 = vector.shape_cast %71 : vector<8xf32> to vector<8x1xf32>
    %c0_58 = arith.constant 0 : index
    %c0_59 = arith.constant 0 : index
    %c0_60 = arith.constant 0 : index
    %73 = vector.load %arg6[%c0_58, %c0_59, %c0_60] : memref<1x8x1xf32, #tpu.memory_space<vmem>>, vector<1x8x1xf32>
    %74 = vector.shape_cast %73 : vector<1x8x1xf32> to vector<8x1xf32>
    %75 = vector.shape_cast %72 : vector<8x1xf32> to vector<1x8x1xf32>
    tpu.vector_store %arg6[%c0_58, %c0_59, %c0_60], %75 {strides = array<i32>} : memref<1x8x1xf32, #tpu.memory_space<vmem>>, vector<1x8x1xf32>,
    return
  }
  func.func @transform_0(%arg0: i32) -> (i32, i32, i32) {
    %c0_i32 = arith.constant 0 : i32
    %c0_i32_0 = arith.constant 0 : i32
    %c0_i32_1 = arith.constant 0 : i32
    return %arg0, %c0_i32, %c0_i32_0 : i32, i32, i32
  }
  func.func @transform_1(%arg0: i32) -> (i32, i32, i32) {
    %c0_i32 = arith.constant 0 : i32
    %c0_i32_0 = arith.constant 0 : i32
    %c0_i32_1 = arith.constant 0 : i32
    %c0_i32_2 = arith.constant 0 : i32
    return %c0_i32, %c0_i32_0, %c0_i32_1 : i32, i32, i32
  }
  func.func @transform_2(%arg0: i32) -> (i32, i32) {
    %c0_i32 = arith.constant 0 : i32
    %c0_i32_0 = arith.constant 0 : i32
    %c0_i32_1 = arith.constant 0 : i32
    return %c0_i32, %c0_i32_0 : i32, i32
  }
  func.func @transform_3(%arg0: i32) -> (i32, i32, i32) {
    %c0_i32 = arith.constant 0 : i32
    %c0_i32_0 = arith.constant 0 : i32
    %c0_i32_1 = arith.constant 0 : i32
    return %arg0, %c0_i32, %c0_i32_0 : i32, i32, i32
  }
  func.func @transform_4(%arg0: i32) -> (i32, i32, i32) {
    %c0_i32 = arith.constant 0 : i32
    %c0_i32_0 = arith.constant 0 : i32
    %c0_i32_1 = arith.constant 0 : i32
    return %arg0, %c0_i32, %c0_i32_0 : i32, i32, i32
  }
  func.func @transform_5(%arg0: i32) -> (i32, i32, i32) {
    %c0_i32 = arith.constant 0 : i32
    %c0_i32_0 = arith.constant 0 : i32
    %c0_i32_1 = arith.constant 0 : i32
    return %arg0, %c0_i32, %c0_i32_0 : i32, i32, i32
  }
}

module attributes {stable_mosaic.version = 11 : i64} {
  func.func @bn_relu_kernel(%arg0: i32, %arg1: memref<1x8x14x16xf32, #tpu.memory_space<vmem>>, %arg2: memref<8x1x1xf32, #tpu.memory_space<vmem>>, %arg3: memref<8x1x1xf32, #tpu.memory_space<vmem>>, %arg4: memref<1x8x14x14xf32, #tpu.memory_space<vmem>>) attributes {dimension_semantics = [#tpu.dimension_semantics<parallel>], iteration_bounds = array<i64: 2>, scalar_prefetch = 0 : i64, scratch_operands = 0 : i64, tpu.core_type = #tpu.core_type<tc>, window_params = [{transform_indices = @transform_0, window_bounds = array<i64: 1, 8, 14, 16>}, {pipeline_mode = #tpu.pipeline_mode<synchronous>, transform_indices = @transform_1, window_bounds = array<i64: 8, 1, 1>}, {pipeline_mode = #tpu.pipeline_mode<synchronous>, transform_indices = @transform_2, window_bounds = array<i64: 8, 1, 1>}, {transform_indices = @transform_3, window_bounds = array<i64: 1, 8, 14, 14>}]} {
    %c0 = arith.constant 0 : index
    %c0_0 = arith.constant 0 : index
    %c0_1 = arith.constant 0 : index
    %c0_2 = arith.constant 0 : index
    %0 = vector.load %arg1[%c0, %c0_0, %c0_1, %c0_2] : memref<1x8x14x16xf32, #tpu.memory_space<vmem>>, vector<1x8x14x14xf32>
    %1 = vector.shape_cast %0 : vector<1x8x14x14xf32> to vector<8x14x14xf32>
    %c0_3 = arith.constant 0 : index
    %c0_4 = arith.constant 0 : index
    %c0_5 = arith.constant 0 : index
    %2 = vector.load %arg2[%c0_3, %c0_4, %c0_5] : memref<8x1x1xf32, #tpu.memory_space<vmem>>, vector<8x1x1xf32>
    %3 = vector.broadcast %2 : vector<8x1x1xf32> to vector<8x14x14xf32>
    %4 = arith.mulf %1, %3 : vector<8x14x14xf32>
    %c0_6 = arith.constant 0 : index
    %c0_7 = arith.constant 0 : index
    %c0_8 = arith.constant 0 : index
    %5 = vector.load %arg3[%c0_6, %c0_7, %c0_8] : memref<8x1x1xf32, #tpu.memory_space<vmem>>, vector<8x1x1xf32>
    %6 = vector.broadcast %5 : vector<8x1x1xf32> to vector<8x14x14xf32>
    %7 = arith.addf %4, %6 : vector<8x14x14xf32>
    %cst = arith.constant 0.000000e+00 : f32
    %8 = vector.broadcast %cst : f32 to vector<8x14x14xf32>
    %9 = arith.maximumf %7, %8 : vector<8x14x14xf32>
    %c0_9 = arith.constant 0 : index
    %c0_10 = arith.constant 0 : index
    %c0_11 = arith.constant 0 : index
    %c0_12 = arith.constant 0 : index
    %10 = vector.load %arg4[%c0_9, %c0_10, %c0_11, %c0_12] : memref<1x8x14x14xf32, #tpu.memory_space<vmem>>, vector<1x8x14x14xf32>
    %11 = vector.shape_cast %10 : vector<1x8x14x14xf32> to vector<8x14x14xf32>
    %12 = vector.shape_cast %9 : vector<8x14x14xf32> to vector<1x8x14x14xf32>
    tpu.vector_store %arg4[%c0_9, %c0_10, %c0_11, %c0_12], %12 {strides = array<i32>} : memref<1x8x14x14xf32, #tpu.memory_space<vmem>>, vector<1x8x14x14xf32>,
    return
  }
  func.func @transform_0(%arg0: i32) -> (i32, i32, i32, i32) {
    %c0_i32 = arith.constant 0 : i32
    %c0_i32_0 = arith.constant 0 : i32
    %c0_i32_1 = arith.constant 0 : i32
    %c0_i32_2 = arith.constant 0 : i32
    return %arg0, %c0_i32, %c0_i32_0, %c0_i32_1 : i32, i32, i32, i32
  }
  func.func @transform_1(%arg0: i32) -> (i32, i32, i32) {
    %c0_i32 = arith.constant 0 : i32
    %c0_i32_0 = arith.constant 0 : i32
    %c0_i32_1 = arith.constant 0 : i32
    %c0_i32_2 = arith.constant 0 : i32
    return %c0_i32, %c0_i32_0, %c0_i32_1 : i32, i32, i32
  }
  func.func @transform_2(%arg0: i32) -> (i32, i32, i32) {
    %c0_i32 = arith.constant 0 : i32
    %c0_i32_0 = arith.constant 0 : i32
    %c0_i32_1 = arith.constant 0 : i32
    %c0_i32_2 = arith.constant 0 : i32
    return %c0_i32, %c0_i32_0, %c0_i32_1 : i32, i32, i32
  }
  func.func @transform_3(%arg0: i32) -> (i32, i32, i32, i32) {
    %c0_i32 = arith.constant 0 : i32
    %c0_i32_0 = arith.constant 0 : i32
    %c0_i32_1 = arith.constant 0 : i32
    %c0_i32_2 = arith.constant 0 : i32
    return %arg0, %c0_i32, %c0_i32_0, %c0_i32_1 : i32, i32, i32, i32
  }
}

</mosaic_0001>

<llo_original>
// kernel: conv_layer_forward.3
$region0: #{conv_layer_forward.3}
  #allocation0 [shape = 'u32[]', space=smem, size = 0x4, offset = 0x4, fixed_abs, tag = 'smem constant byte address 0x4 - core index']
  #allocation1 [shape = 'u32[144,128]{1,0:T(1,128)}', space=vmem, size = 0x12000, scoped, tag = 'internal scratch']
  %s0 = inlined_call_operand.vmem [shape: f32[2,8,14,16], index: 0, kind: input, shape index: {}]
  %s1 = inlined_call_operand.vmem [shape: f32[8,1,1], index: 1, kind: input, shape index: {}]
  %s2 = inlined_call_operand.vmem [shape: f32[8,1,1], index: 2, kind: input, shape index: {}]
  %s3 = inlined_call_operand.vmem [shape: f32[2,8,14,14], index: 3, kind: output, shape index: {}]
  %s4 = sld [smem:[#allocation0]]
  $region45: #{conv_layer_forward.3} parent=0
    _
  %s6 = ssub.s32 1, %s4
  %s7 = scalar_select 0, %s6, %s4
  loop: start=0, step=1, limit=4
  $region2: #{conv_layer_forward.3} parent=0 // loop_pre_header
    _
  $region3: #{conv_layer_forward.3} parent=0 // loop_header
    %s9 = sphi 0, %s13
    %p10 = scmp.ge.s32.totalorder %s9, 4
    %s19 = sphi 0, %s21
    %s22 = sphi 0, %s19
    %s23 = sphi 0, %s22
    %s39 = sphi 0, %s23
    %s43 = sphi 0, %s43
    %s45 = sphi 0, %s43
    %s46 = sphi 0, %s45
    %s60 = sphi 0, %s46
    %s64 = sphi 0, %s64
    %s66 = sphi 0, %s64
    %s67 = sphi 0, %s66
    %s81 = sphi 0, %s67
    %s87 = sphi 0, %s89
    %s90 = sphi 0, %s87
    %s91 = sphi 0, %s90
    %s107 = sphi 0, %s91
  $region4: #{conv_layer_forward.3} parent=0 // loop_header_branch
    %12 = sbr.rel (%p10) target = $region8
  $region5: #{conv_layer_forward.3} parent=0 // loop_body
    %s14 = ssub.s32 %s9, 1
    %s15 = ssub.s32 %s9, 2
    %s16 = sadd.s32 %s9, 1
    %s17 = ssub.s32 %s9, %s16
    %p18 = scmp.eq.s32.totalorder %s17, 0
    %s20 = sadd.s32 %s19, 1
    %s21 = scalar_select %p18, %s19, %s20
    %p24 = pneg %p18
    %p25 = scmp.eq.s32.totalorder %s9, 1
    %p26 = por %p24, %p25
    %p27 = scmp.ne.s32.totalorder %s19, %s22
    %p28 = scmp.eq.s32.totalorder %s9, 0
    %p29 = por %p27, %p28
    %p30 = scmp.ne.s32.totalorder %s19, %s22
    %p31 = scmp.eq.s32.totalorder %s14, 1
    %p32 = por %p30, %p31
    %p33 = scmp.ne.s32.totalorder %s22, %s23
    %p34 = scmp.eq.s32.totalorder %s14, 0
    %p35 = por %p33, %p34
    %p36 = scmp.ne.s32.totalorder %s22, %s23
    %p37 = scmp.eq.s32.totalorder %s15, 1
    %p38 = por %p36, %p37
    %p40 = scmp.ne.s32.totalorder %s23, %s39
    %p41 = scmp.eq.s32.totalorder %s15, 0
    %p42 = por %p40, %p41
    %s44 = sadd.s32 %s43, 1
    %p47 = scmp.eq.s32.totalorder %s9, 1
    %p48 = scmp.ne.s32.totalorder %s43, %s45
    %p49 = scmp.eq.s32.totalorder %s9, 0
    %p50 = por %p48, %p49
    %p51 = scmp.ne.s32.totalorder %s43, %s45
    %p52 = scmp.eq.s32.totalorder %s14, 1
    %p53 = por %p51, %p52
    %p54 = scmp.ne.s32.totalorder %s45, %s46
    %p55 = scmp.eq.s32.totalorder %s14, 0
    %p56 = por %p54, %p55
    %p57 = scmp.ne.s32.totalorder %s45, %s46
    %p58 = scmp.eq.s32.totalorder %s15, 1
    %p59 = por %p57, %p58
    %p61 = scmp.ne.s32.totalorder %s46, %s60
    %p62 = scmp.eq.s32.totalorder %s15, 0
    %p63 = por %p61, %p62
    %s65 = sadd.s32 %s64, 1
    %p68 = scmp.eq.s32.totalorder %s9, 1
    %p69 = scmp.ne.s32.totalorder %s64, %s66
    %p70 = scmp.eq.s32.totalorder %s9, 0
    %p71 = por %p69, %p70
    %p72 = scmp.ne.s32.totalorder %s64, %s66
    %p73 = scmp.eq.s32.totalorder %s14, 1
    %p74 = por %p72, %p73
    %p75 = scmp.ne.s32.totalorder %s66, %s67
    %p76 = scmp.eq.s32.totalorder %s14, 0
    %p77 = por %p75, %p76
    %p78 = scmp.ne.s32.totalorder %s66, %s67
    %p79 = scmp.eq.s32.totalorder %s15, 1
    %p80 = por %p78, %p79
    %p82 = scmp.ne.s32.totalorder %s67, %s81
    %p83 = scmp.eq.s32.totalorder %s15, 0
    %p84 = por %p82, %p83
    %s85 = ssub.s32 %s9, %s16
    %p86 = scmp.eq.s32.totalorder %s85, 0
    %s88 = sadd.s32 %s87, 1
    %s89 = scalar_select %p86, %s87, %s88
    %p92 = pneg %p86
    %p93 = scmp.eq.s32.totalorder %s9, 1
    %p94 = por %p92, %p93
    %p95 = scmp.ne.s32.totalorder %s87, %s90
    %p96 = scmp.eq.s32.totalorder %s9, 0
    %p97 = por %p95, %p96
    %p98 = scmp.ne.s32.totalorder %s87, %s90
    %p99 = scmp.eq.s32.totalorder %s14, 1
    %p100 = por %p98, %p99
    %p101 = scmp.ne.s32.totalorder %s90, %s91
    %p102 = scmp.eq.s32.totalorder %s14, 0
    %p103 = por %p101, %p102
    %p104 = scmp.ne.s32.totalorder %s90, %s91
    %p105 = scmp.eq.s32.totalorder %s15, 1
    %p106 = por %p104, %p105
    %p108 = scmp.ne.s32.totalorder %s91, %s107
    %p109 = scmp.eq.s32.totalorder %s15, 0
    %p110 = por %p108, %p109
    %p111 = scmp.le.s32.totalorder 1, %s9
    %p112 = scmp.lt.s32.totalorder %s9, 3
    %p113 = pnand %p111, %p112
    %p114 = pneg %p113
    // Predicated region
    $region9: #{conv_layer_forward.3} parent=5 // pred_check
      _
    $region10: #{conv_layer_forward.3} parent=5 // pred_check_branch
      %116 = sbr.rel (%p113) target = $region12
    $region11: #{conv_layer_forward.3} parent=5 // pred_region
      %s117 = ssub.s32 %s9, 1
      // Predicated region
      $region13: #{conv_layer_forward.3} parent=11 // pred_check
        %p118 = pneg %p56
      $region14: #{conv_layer_forward.3} parent=11 // pred_check_branch
        %120 = sbr.rel (%p118) target = $region16
      $region15: #{conv_layer_forward.3} parent=11 // pred_region
        _
      $region16: #{conv_layer_forward.3} parent=11 // pred_fallthru
        _
      // Predicated region
      $region17: #{conv_layer_forward.3} parent=11 // pred_check
        %p121 = pneg %p77
      $region18: #{conv_layer_forward.3} parent=11 // pred_check_branch
        %123 = sbr.rel (%p121) target = $region20
      $region19: #{conv_layer_forward.3} parent=11 // pred_region
        _
      $region20: #{conv_layer_forward.3} parent=11 // pred_fallthru
        _
    $region12: #{conv_layer_forward.3} parent=5 // pred_fallthru
      _
    %p124 = scmp.lt.s32.totalorder %s9, 2
    // Predicated region
    $region21: #{conv_layer_forward.3} parent=5 // pred_check
      %p125 = pneg %p124
    $region22: #{conv_layer_forward.3} parent=5 // pred_check_branch
      %127 = sbr.rel (%p125) target = $region24
    $region23: #{conv_layer_forward.3} parent=5 // pred_region
      // Predicated region
      $region25: #{conv_layer_forward.3} parent=23 // pred_check
        %p128 = pneg %p29
      $region26: #{conv_layer_forward.3} parent=23 // pred_check_branch
        %130 = sbr.rel (%p128) target = $region28
      $region27: #{conv_layer_forward.3} parent=23 // pred_region
        %p131 = scmp.lt.s32.totalorder %s9, 1
        %s132 = scalar_select %p131, %s9, 1
        %s133 = smul.addr %s132, 16
        %s134 = smul.addr %s133, 8
        %s135 = scalar_lea.vmem %s0, %s134
      $region28: #{conv_layer_forward.3} parent=23 // pred_fallthru
        _
    $region24: #{conv_layer_forward.3} parent=5 // pred_fallthru
      _
    %p136 = scmp.le.s32.totalorder 1, %s9
    %p137 = scmp.lt.s32.totalorder %s9, 3
    %p138 = pnand %p136, %p137
    %p139 = pneg %p138
    // Predicated region
    $region29: #{conv_layer_forward.3} parent=5 // pred_check
      _
    $region30: #{conv_layer_forward.3} parent=5 // pred_check_branch
      %141 = sbr.rel (%p138) target = $region32
    $region31: #{conv_layer_forward.3} parent=5 // pred_region
      %s142 = ssub.s32 %s9, 1
      %p143 = scmp.lt.s32.totalorder %s14, 1
      %s144 = scalar_select %p143, %s14, 1
      %s145 = smul.addr %s144, 16
      %s146 = smul.addr %s145, 8
      %s147 = scalar_lea.vmem %s0, %s146
      %p148 = pneg %p35
      %p149 = pneg %p32
      %p150 = pneg %p56
      %p151 = pneg %p53
      %p152 = pneg %p77
      %p153 = pneg %p74
      %p154 = pneg %p103
      %p155 = pneg %p100
      %p156 = scmp.lt.s32.totalorder %s14, 1
      %s157 = scalar_select %p156, %s14, 1
      %s158 = smul.addr %s157, 16
      %s159 = smul.addr %s158, 8
      %s160 = scalar_lea.vmem %s3, %s159
      %p161 = scmp.lt.s32.totalorder %s14, 1
      %s162 = scalar_select %p161, %s14, 1
      %s163 = smul.addr %s162, 16
      %s164 = smul.addr %s163, 8
      %s165 = scalar_lea.vmem %s0, %s164
      %p166 = scmp.lt.s32.totalorder %s14, 1
      %s167 = scalar_select %p166, %s14, 1
      %s168 = smul.addr %s167, 16
      %s169 = smul.addr %s168, 8
      %s170 = scalar_lea.vmem %s3, %s169
      %v171 = vld [vmem:[%s165] sm:$0xff]
      %v172 = vld [vmem:[%s165 + $0x8] sm:$0x3f]
      %v173 = vld [vmem:[%s165 + $0x10] sm:$0xff]
      %v174 = vld [vmem:[%s165 + $0x18] sm:$0x3f]
      %v175 = vld [vmem:[%s165 + $0x20] sm:$0xff]
      %v176 = vld [vmem:[%s165 + $0x28] sm:$0x3f]
      %v177 = vld [vmem:[%s165 + $0x30] sm:$0xff]
      %v178 = vld [vmem:[%s165 + $0x38] sm:$0x3f]
      %v179 = vld [vmem:[%s165 + $0x40] sm:$0xff]
      %v180 = vld [vmem:[%s165 + $0x48] sm:$0x3f]
      %v181 = vld [vmem:[%s165 + $0x50] sm:$0xff]
      %v182 = vld [vmem:[%s165 + $0x58] sm:$0x3f]
      %v183 = vld [vmem:[%s165 + $0x60] sm:$0xff]
      %v184 = vld [vmem:[%s165 + $0x68] sm:$0x3f]
      %v185 = vld [vmem:[%s165 + $0x70] sm:$0xff]
      %v186 = vld [vmem:[%s165 + $0x78] sm:$0x3f]
      %v187 = vld [vmem:[%s1] sm:$0x1]
      %v188 = vld [vmem:[%s1 + $0x1] sm:$0x1]
      %v189 = vld [vmem:[%s1 + $0x2] sm:$0x1]
      %v190 = vld [vmem:[%s1 + $0x3] sm:$0x1]
      %v191 = vld [vmem:[%s1 + $0x4] sm:$0x1]
      %v192 = vld [vmem:[%s1 + $0x5] sm:$0x1]
      %v193 = vld [vmem:[%s1 + $0x6] sm:$0x1]
      %v194 = vld [vmem:[%s1 + $0x7] sm:$0x1]
      %v203 = vlaneseq
      %v204 = vshrl.u32 %v203, 7
      %v205 = vsub.s32 0, %v204
      %v206 = vrot.slane %v187, %v205
      %v207 = vlaneseq
      %v208 = vshrl.u32 %v207, 7
      %v209 = vsub.s32 0, %v208
      %v210 = vrot.slane %v188, %v209
      %v211 = vlaneseq
      %v212 = vshrl.u32 %v211, 7
      %v213 = vsub.s32 0, %v212
      %v214 = vrot.slane %v189, %v213
      %v215 = vlaneseq
      %v216 = vshrl.u32 %v215, 7
      %v217 = vsub.s32 0, %v216
      %v218 = vrot.slane %v190, %v217
      %v219 = vlaneseq
      %v220 = vshrl.u32 %v219, 7
      %v221 = vsub.s32 0, %v220
      %v222 = vrot.slane %v191, %v221
      %v223 = vlaneseq
      %v224 = vshrl.u32 %v223, 7
      %v225 = vsub.s32 0, %v224
      %v226 = vrot.slane %v192, %v225
      %v227 = vlaneseq
      %v228 = vshrl.u32 %v227, 7
      %v229 = vsub.s32 0, %v228
      %v230 = vrot.slane %v193, %v229
      %v231 = vlaneseq
      %v232 = vshrl.u32 %v231, 7
      %v233 = vsub.s32 0, %v232
      %v234 = vrot.slane %v194, %v233
      %235 = vset.pattern.permute.xlu0 0
      %236 = vperm.xlu0 %235, %v206
      %v237 = vpop.permute.xlu0 %236
      %239 = vset.pattern.permute.xlu0 0
      %240 = vperm.xlu0 %239, %v210
      %v241 = vpop.permute.xlu0 %240
      %243 = vset.pattern.permute.xlu0 0
      %244 = vperm.xlu0 %243, %v214
      %v245 = vpop.permute.xlu0 %244
      %247 = vset.pattern.permute.xlu0 0
      %248 = vperm.xlu0 %247, %v218
      %v249 = vpop.permute.xlu0 %248
      %251 = vset.pattern.permute.xlu0 0
      %252 = vperm.xlu0 %251, %v222
      %v253 = vpop.permute.xlu0 %252
      %255 = vset.pattern.permute.xlu0 0
      %256 = vperm.xlu0 %255, %v226
      %v257 = vpop.permute.xlu0 %256
      %259 = vset.pattern.permute.xlu0 0
      %260 = vperm.xlu0 %259, %v230
      %v261 = vpop.permute.xlu0 %260
      %263 = vset.pattern.permute.xlu0 0
      %264 = vperm.xlu0 %263, %v234
      %v265 = vpop.permute.xlu0 %264
      %v267 = vmul.f32 %v171, %v237
      %v268 = vmul.f32 %v172, %v237
      %v269 = vmul.f32 %v173, %v241
      %v270 = vmul.f32 %v174, %v241
      %v271 = vmul.f32 %v175, %v245
      %v272 = vmul.f32 %v176, %v245
      %v273 = vmul.f32 %v177, %v249
      %v274 = vmul.f32 %v178, %v249
      %v275 = vmul.f32 %v179, %v253
      %v276 = vmul.f32 %v180, %v253
      %v277 = vmul.f32 %v181, %v257
      %v278 = vmul.f32 %v182, %v257
      %v279 = vmul.f32 %v183, %v261
      %v280 = vmul.f32 %v184, %v261
      %v281 = vmul.f32 %v185, %v265
      %v282 = vmul.f32 %v186, %v265
      %v283 = vld [vmem:[%s2] sm:$0x1]
      %v284 = vld [vmem:[%s2 + $0x1] sm:$0x1]
      %v285 = vld [vmem:[%s2 + $0x2] sm:$0x1]
      %v286 = vld [vmem:[%s2 + $0x3] sm:$0x1]
      %v287 = vld [vmem:[%s2 + $0x4] sm:$0x1]
      %v288 = vld [vmem:[%s2 + $0x5] sm:$0x1]
      %v289 = vld [vmem:[%s2 + $0x6] sm:$0x1]
      %v290 = vld [vmem:[%s2 + $0x7] sm:$0x1]
      %v299 = vlaneseq
      %v300 = vshrl.u32 %v299, 7
      %v301 = vsub.s32 0, %v300
      %v302 = vrot.slane %v283, %v301
      %v303 = vlaneseq
      %v304 = vshrl.u32 %v303, 7
      %v305 = vsub.s32 0, %v304
      %v306 = vrot.slane %v284, %v305
      %v307 = vlaneseq
      %v308 = vshrl.u32 %v307, 7
      %v309 = vsub.s32 0, %v308
      %v310 = vrot.slane %v285, %v309
      %v311 = vlaneseq
      %v312 = vshrl.u32 %v311, 7
      %v313 = vsub.s32 0, %v312
      %v314 = vrot.slane %v286, %v313
      %v315 = vlaneseq
      %v316 = vshrl.u32 %v315, 7
      %v317 = vsub.s32 0, %v316
      %v318 = vrot.slane %v287, %v317
      %v319 = vlaneseq
      %v320 = vshrl.u32 %v319, 7
      %v321 = vsub.s32 0, %v320
      %v322 = vrot.slane %v288, %v321
      %v323 = vlaneseq
      %v324 = vshrl.u32 %v323, 7
      %v325 = vsub.s32 0, %v324
      %v326 = vrot.slane %v289, %v325
      %v327 = vlaneseq
      %v328 = vshrl.u32 %v327, 7
      %v329 = vsub.s32 0, %v328
      %v330 = vrot.slane %v290, %v329
      %331 = vset.pattern.permute.xlu0 0
      %332 = vperm.xlu0 %331, %v302
      %v333 = vpop.permute.xlu0 %332
      %335 = vset.pattern.permute.xlu0 0
      %336 = vperm.xlu0 %335, %v306
      %v337 = vpop.permute.xlu0 %336
      %339 = vset.pattern.permute.xlu0 0
      %340 = vperm.xlu0 %339, %v310
      %v341 = vpop.permute.xlu0 %340
      %343 = vset.pattern.permute.xlu0 0
      %344 = vperm.xlu0 %343, %v314
      %v345 = vpop.permute.xlu0 %344
      %347 = vset.pattern.permute.xlu0 0
      %348 = vperm.xlu0 %347, %v318
      %v349 = vpop.permute.xlu0 %348
      %351 = vset.pattern.permute.xlu0 0
      %352 = vperm.xlu0 %351, %v322
      %v353 = vpop.permute.xlu0 %352
      %355 = vset.pattern.permute.xlu0 0
      %356 = vperm.xlu0 %355, %v326
      %v357 = vpop.permute.xlu0 %356
      %359 = vset.pattern.permute.xlu0 0
      %360 = vperm.xlu0 %359, %v330
      %v361 = vpop.permute.xlu0 %360
      %v363 = vadd.f32 %v267, %v333
      %v364 = vadd.f32 %v268, %v333
      %v365 = vadd.f32 %v269, %v337
      %v366 = vadd.f32 %v270, %v337
      %v367 = vadd.f32 %v271, %v341
      %v368 = vadd.f32 %v272, %v341
      %v369 = vadd.f32 %v273, %v345
      %v370 = vadd.f32 %v274, %v345
      %v371 = vadd.f32 %v275, %v349
      %v372 = vadd.f32 %v276, %v349
      %v373 = vadd.f32 %v277, %v353
      %v374 = vadd.f32 %v278, %v353
      %v375 = vadd.f32 %v279, %v357
      %v376 = vadd.f32 %v280, %v357
      %v377 = vadd.f32 %v281, %v361
      %v378 = vadd.f32 %v282, %v361
      %v379 = vmax.f32 %v363, 0.0
      %v380 = vmax.f32 %v364, 0.0
      %v381 = vmax.f32 %v365, 0.0
      %v382 = vmax.f32 %v366, 0.0
      %v383 = vmax.f32 %v367, 0.0
      %v384 = vmax.f32 %v368, 0.0
      %v385 = vmax.f32 %v369, 0.0
      %v386 = vmax.f32 %v370, 0.0
      %v387 = vmax.f32 %v371, 0.0
      %v388 = vmax.f32 %v372, 0.0
      %v389 = vmax.f32 %v373, 0.0
      %v390 = vmax.f32 %v374, 0.0
      %v391 = vmax.f32 %v375, 0.0
      %v392 = vmax.f32 %v376, 0.0
      %v393 = vmax.f32 %v377, 0.0
      %v394 = vmax.f32 %v378, 0.0
      %vm395 = vcmask 113664
      %396 = vst.msk [vmem:[%s170] sm:$0xff] %vm395, %v379
      %vm397 = vcmask 111616
      %398 = vst.msk [vmem:[%s170 + $0x8] sm:$0x3f] %vm397, %v380
      %399 = vst.msk [vmem:[%s170 + $0x10] sm:$0xff] %vm395, %v381
      %400 = vst.msk [vmem:[%s170 + $0x18] sm:$0x3f] %vm397, %v382
      %401 = vst.msk [vmem:[%s170 + $0x20] sm:$0xff] %vm395, %v383
      %402 = vst.msk [vmem:[%s170 + $0x28] sm:$0x3f] %vm397, %v384
      %403 = vst.msk [vmem:[%s170 + $0x30] sm:$0xff] %vm395, %v385
      %404 = vst.msk [vmem:[%s170 + $0x38] sm:$0x3f] %vm397, %v386
      %405 = vst.msk [vmem:[%s170 + $0x40] sm:$0xff] %vm395, %v387
      %406 = vst.msk [vmem:[%s170 + $0x48] sm:$0x3f] %vm397, %v388
      %407 = vst.msk [vmem:[%s170 + $0x50] sm:$0xff] %vm395, %v389
      %408 = vst.msk [vmem:[%s170 + $0x58] sm:$0x3f] %vm397, %v390
      %409 = vst.msk [vmem:[%s170 + $0x60] sm:$0xff] %vm395, %v391
      %410 = vst.msk [vmem:[%s170 + $0x68] sm:$0x3f] %vm397, %v392
      %411 = vst.msk [vmem:[%s170 + $0x70] sm:$0xff] %vm395, %v393
      %412 = vst.msk [vmem:[%s170 + $0x78] sm:$0x3f] %vm397, %v394
      %p413 = scmp.lt.s32.totalorder %s14, 1
      %s414 = scalar_select %p413, %s14, 1
      %s415 = smul.addr %s414, 16
      %s416 = smul.addr %s415, 8
      %s417 = scalar_lea.vmem %s3, %s416
      // Predicated region
      $region33: #{conv_layer_forward.3} parent=31 // pred_check
        %p418 = pneg %p100
      $region34: #{conv_layer_forward.3} parent=31 // pred_check_branch
        %420 = sbr.rel (%p418) target = $region36
      $region35: #{conv_layer_forward.3} parent=31 // pred_region
        _
      $region36: #{conv_layer_forward.3} parent=31 // pred_fallthru
        _
    $region32: #{conv_layer_forward.3} parent=5 // pred_fallthru
      _
    %p421 = scmp.le.s32.totalorder 2, %s9
    // Predicated region
    $region37: #{conv_layer_forward.3} parent=5 // pred_check
      %p422 = pneg %p421
    $region38: #{conv_layer_forward.3} parent=5 // pred_check_branch
      %424 = sbr.rel (%p422) target = $region40
    $region39: #{conv_layer_forward.3} parent=5 // pred_region
      %s425 = ssub.s32 %s9, 2
      // Predicated region
      $region41: #{conv_layer_forward.3} parent=39 // pred_check
        %p426 = pneg %p106
      $region42: #{conv_layer_forward.3} parent=39 // pred_check_branch
        %428 = sbr.rel (%p426) target = $region44
      $region43: #{conv_layer_forward.3} parent=39 // pred_region
        %p429 = scmp.lt.s32.totalorder %s15, 1
        %s430 = scalar_select %p429, %s15, 1
        %s431 = smul.addr %s430, 16
        %s432 = smul.addr %s431, 8
        %s433 = scalar_lea.vmem %s3, %s432
      $region44: #{conv_layer_forward.3} parent=39 // pred_fallthru
        _
    $region40: #{conv_layer_forward.3} parent=5 // pred_fallthru
      _
  $region6: #{conv_layer_forward.3} parent=0 // loop_footer
    %s13 = sadd.s32 1, %s9
  $region7: #{conv_layer_forward.3} parent=0 // loop_footer_branch
    %8 = sbr.rel target = $region3
  $region8: #{conv_layer_forward.3} parent=0 // loop_exit
    _

// kernel: conv_layer_forward.2
$region0: #{conv_layer_forward.2}
  #allocation0 [shape = 'u32[]', space=smem, size = 0x4, offset = 0x4, fixed_abs, tag = 'smem constant byte address 0x4 - core index']
  #allocation1 [shape = 'u32[144,128]{1,0:T(1,128)}', space=vmem, size = 0x12000, scoped, tag = 'internal scratch']
  %s0 = inlined_call_operand.vmem [shape: bf16[2,4,384], index: 0, kind: input, shape index: {}]
  %s1 = inlined_call_operand.vmem [shape: bf16[9,8,4], index: 1, kind: input, shape index: {}]
  %s2 = inlined_call_operand.vmem [shape: f32[1,224], index: 2, kind: input, shape index: {}]
  %s3 = inlined_call_operand.vmem [shape: f32[2,8,224], index: 3, kind: output, shape index: {0}]
  %s4 = inlined_call_operand.vmem [shape: f32[2,8,1], index: 4, kind: output, shape index: {1}]
  %s5 = inlined_call_operand.vmem [shape: f32[2,8,1], index: 5, kind: output, shape index: {2}]
  %6 = xla_tuple %s3, %s4, %s5
  %s7 = sld [smem:[#allocation0]]
  $region61: #{conv_layer_forward.2} parent=0
    _
  %s9 = ssub.s32 1, %s7
  %s10 = scalar_select 0, %s9, %s7
  loop: start=0, step=1, limit=4
  $region2: #{conv_layer_forward.2} parent=0 // loop_pre_header
    _
  $region3: #{conv_layer_forward.2} parent=0 // loop_header
    %s12 = sphi 0, %s16
    %p13 = scmp.ge.s32.totalorder %s12, 4
    %s22 = sphi 0, %s24
    %s25 = sphi 0, %s22
    %s26 = sphi 0, %s25
    %s42 = sphi 0, %s26
    %s46 = sphi 0, %s46
    %s48 = sphi 0, %s46
    %s49 = sphi 0, %s48
    %s63 = sphi 0, %s49
    %s67 = sphi 0, %s67
    %s69 = sphi 0, %s67
    %s70 = sphi 0, %s69
    %s84 = sphi 0, %s70
    %s90 = sphi 0, %s92
    %s93 = sphi 0, %s90
    %s94 = sphi 0, %s93
    %s110 = sphi 0, %s94
    %s116 = sphi 0, %s118
    %s119 = sphi 0, %s116
    %s120 = sphi 0, %s119
    %s136 = sphi 0, %s120
    %s142 = sphi 0, %s144
    %s145 = sphi 0, %s142
    %s146 = sphi 0, %s145
    %s162 = sphi 0, %s146
  $region4: #{conv_layer_forward.2} parent=0 // loop_header_branch
    %15 = sbr.rel (%p13) target = $region8
  $region5: #{conv_layer_forward.2} parent=0 // loop_body
    %s17 = ssub.s32 %s12, 1
    %s18 = ssub.s32 %s12, 2
    %s19 = sadd.s32 %s12, 1
    %s20 = ssub.s32 %s12, %s19
    %p21 = scmp.eq.s32.totalorder %s20, 0
    %s23 = sadd.s32 %s22, 1
    %s24 = scalar_select %p21, %s22, %s23
    %p27 = pneg %p21
    %p28 = scmp.eq.s32.totalorder %s12, 1
    %p29 = por %p27, %p28
    %p30 = scmp.ne.s32.totalorder %s22, %s25
    %p31 = scmp.eq.s32.totalorder %s12, 0
    %p32 = por %p30, %p31
    %p33 = scmp.ne.s32.totalorder %s22, %s25
    %p34 = scmp.eq.s32.totalorder %s17, 1
    %p35 = por %p33, %p34
    %p36 = scmp.ne.s32.totalorder %s25, %s26
    %p37 = scmp.eq.s32.totalorder %s17, 0
    %p38 = por %p36, %p37
    %p39 = scmp.ne.s32.totalorder %s25, %s26
    %p40 = scmp.eq.s32.totalorder %s18, 1
    %p41 = por %p39, %p40
    %p43 = scmp.ne.s32.totalorder %s26, %s42
    %p44 = scmp.eq.s32.totalorder %s18, 0
    %p45 = por %p43, %p44
    %s47 = sadd.s32 %s46, 1
    %p50 = scmp.eq.s32.totalorder %s12, 1
    %p51 = scmp.ne.s32.totalorder %s46, %s48
    %p52 = scmp.eq.s32.totalorder %s12, 0
    %p53 = por %p51, %p52
    %p54 = scmp.ne.s32.totalorder %s46, %s48
    %p55 = scmp.eq.s32.totalorder %s17, 1
    %p56 = por %p54, %p55
    %p57 = scmp.ne.s32.totalorder %s48, %s49
    %p58 = scmp.eq.s32.totalorder %s17, 0
    %p59 = por %p57, %p58
    %p60 = scmp.ne.s32.totalorder %s48, %s49
    %p61 = scmp.eq.s32.totalorder %s18, 1
    %p62 = por %p60, %p61
    %p64 = scmp.ne.s32.totalorder %s49, %s63
    %p65 = scmp.eq.s32.totalorder %s18, 0
    %p66 = por %p64, %p65
    %s68 = sadd.s32 %s67, 1
    %p71 = scmp.eq.s32.totalorder %s12, 1
    %p72 = scmp.ne.s32.totalorder %s67, %s69
    %p73 = scmp.eq.s32.totalorder %s12, 0
    %p74 = por %p72, %p73
    %p75 = scmp.ne.s32.totalorder %s67, %s69
    %p76 = scmp.eq.s32.totalorder %s17, 1
    %p77 = por %p75, %p76
    %p78 = scmp.ne.s32.totalorder %s69, %s70
    %p79 = scmp.eq.s32.totalorder %s17, 0
    %p80 = por %p78, %p79
    %p81 = scmp.ne.s32.totalorder %s69, %s70
    %p82 = scmp.eq.s32.totalorder %s18, 1
    %p83 = por %p81, %p82
    %p85 = scmp.ne.s32.totalorder %s70, %s84
    %p86 = scmp.eq.s32.totalorder %s18, 0
    %p87 = por %p85, %p86
    %s88 = ssub.s32 %s12, %s19
    %p89 = scmp.eq.s32.totalorder %s88, 0
    %s91 = sadd.s32 %s90, 1
    %s92 = scalar_select %p89, %s90, %s91
    %p95 = pneg %p89
    %p96 = scmp.eq.s32.totalorder %s12, 1
    %p97 = por %p95, %p96
    %p98 = scmp.ne.s32.totalorder %s90, %s93
    %p99 = scmp.eq.s32.totalorder %s12, 0
    %p100 = por %p98, %p99
    %p101 = scmp.ne.s32.totalorder %s90, %s93
    %p102 = scmp.eq.s32.totalorder %s17, 1
    %p103 = por %p101, %p102
    %p104 = scmp.ne.s32.totalorder %s93, %s94
    %p105 = scmp.eq.s32.totalorder %s17, 0
    %p106 = por %p104, %p105
    %p107 = scmp.ne.s32.totalorder %s93, %s94
    %p108 = scmp.eq.s32.totalorder %s18, 1
    %p109 = por %p107, %p108
    %p111 = scmp.ne.s32.totalorder %s94, %s110
    %p112 = scmp.eq.s32.totalorder %s18, 0
    %p113 = por %p111, %p112
    %s114 = ssub.s32 %s12, %s19
    %p115 = scmp.eq.s32.totalorder %s114, 0
    %s117 = sadd.s32 %s116, 1
    %s118 = scalar_select %p115, %s116, %s117
    %p121 = pneg %p115
    %p122 = scmp.eq.s32.totalorder %s12, 1
    %p123 = por %p121, %p122
    %p124 = scmp.ne.s32.totalorder %s116, %s119
    %p125 = scmp.eq.s32.totalorder %s12, 0
    %p126 = por %p124, %p125
    %p127 = scmp.ne.s32.totalorder %s116, %s119
    %p128 = scmp.eq.s32.totalorder %s17, 1
    %p129 = por %p127, %p128
    %p130 = scmp.ne.s32.totalorder %s119, %s120
    %p131 = scmp.eq.s32.totalorder %s17, 0
    %p132 = por %p130, %p131
    %p133 = scmp.ne.s32.totalorder %s119, %s120
    %p134 = scmp.eq.s32.totalorder %s18, 1
    %p135 = por %p133, %p134
    %p137 = scmp.ne.s32.totalorder %s120, %s136
    %p138 = scmp.eq.s32.totalorder %s18, 0
    %p139 = por %p137, %p138
    %s140 = ssub.s32 %s12, %s19
    %p141 = scmp.eq.s32.totalorder %s140, 0
    %s143 = sadd.s32 %s142, 1
    %s144 = scalar_select %p141, %s142, %s143
    %p147 = pneg %p141
    %p148 = scmp.eq.s32.totalorder %s12, 1
    %p149 = por %p147, %p148
    %p150 = scmp.ne.s32.totalorder %s142, %s145
    %p151 = scmp.eq.s32.totalorder %s12, 0
    %p152 = por %p150, %p151
    %p153 = scmp.ne.s32.totalorder %s142, %s145
    %p154 = scmp.eq.s32.totalorder %s17, 1
    %p155 = por %p153, %p154
    %p156 = scmp.ne.s32.totalorder %s145, %s146
    %p157 = scmp.eq.s32.totalorder %s17, 0
    %p158 = por %p156, %p157
    %p159 = scmp.ne.s32.totalorder %s145, %s146
    %p160 = scmp.eq.s32.totalorder %s18, 1
    %p161 = por %p159, %p160
    %p163 = scmp.ne.s32.totalorder %s146, %s162
    %p164 = scmp.eq.s32.totalorder %s18, 0
    %p165 = por %p163, %p164
    %p166 = scmp.le.s32.totalorder 1, %s12
    %p167 = scmp.lt.s32.totalorder %s12, 3
    %p168 = pnand %p166, %p167
    %p169 = pneg %p168
    // Predicated region
    $region9: #{conv_layer_forward.2} parent=5 // pred_check
      _
    $region10: #{conv_layer_forward.2} parent=5 // pred_check_branch
      %171 = sbr.rel (%p168) target = $region12
    $region11: #{conv_layer_forward.2} parent=5 // pred_region
      %s172 = ssub.s32 %s12, 1
      // Predicated region
      $region13: #{conv_layer_forward.2} parent=11 // pred_check
        %p173 = pneg %p59
      $region14: #{conv_layer_forward.2} parent=11 // pred_check_branch
        %175 = sbr.rel (%p173) target = $region16
      $region15: #{conv_layer_forward.2} parent=11 // pred_region
        _
      $region16: #{conv_layer_forward.2} parent=11 // pred_fallthru
        _
      // Predicated region
      $region17: #{conv_layer_forward.2} parent=11 // pred_check
        %p176 = pneg %p80
      $region18: #{conv_layer_forward.2} parent=11 // pred_check_branch
        %178 = sbr.rel (%p176) target = $region20
      $region19: #{conv_layer_forward.2} parent=11 // pred_region
        _
      $region20: #{conv_layer_forward.2} parent=11 // pred_fallthru
        _
    $region12: #{conv_layer_forward.2} parent=5 // pred_fallthru
      _
    %p179 = scmp.lt.s32.totalorder %s12, 2
    // Predicated region
    $region21: #{conv_layer_forward.2} parent=5 // pred_check
      %p180 = pneg %p179
    $region22: #{conv_layer_forward.2} parent=5 // pred_check_branch
      %182 = sbr.rel (%p180) target = $region24
    $region23: #{conv_layer_forward.2} parent=5 // pred_region
      // Predicated region
      $region25: #{conv_layer_forward.2} parent=23 // pred_check
        %p183 = pneg %p32
      $region26: #{conv_layer_forward.2} parent=23 // pred_check_branch
        %185 = sbr.rel (%p183) target = $region28
      $region27: #{conv_layer_forward.2} parent=23 // pred_region
        %p186 = scmp.lt.s32.totalorder %s12, 1
        %s187 = scalar_select %p186, %s12, 1
        %s188 = smul.addr %s187, 3
        %s189 = smul.addr %s188, 2
        %s190 = scalar_lea.vmem %s0, %s189
      $region28: #{conv_layer_forward.2} parent=23 // pred_fallthru
        _
    $region24: #{conv_layer_forward.2} parent=5 // pred_fallthru
      _
    %p191 = scmp.le.s32.totalorder 1, %s12
    %p192 = scmp.lt.s32.totalorder %s12, 3
    %p193 = pnand %p191, %p192
    %p194 = pneg %p193
    // Predicated region
    $region29: #{conv_layer_forward.2} parent=5 // pred_check
      _
    $region30: #{conv_layer_forward.2} parent=5 // pred_check_branch
      %196 = sbr.rel (%p193) target = $region32
    $region31: #{conv_layer_forward.2} parent=5 // pred_region
      %s197 = ssub.s32 %s12, 1
      %p198 = scmp.lt.s32.totalorder %s17, 1
      %s199 = scalar_select %p198, %s17, 1
      %s200 = smul.addr %s199, 3
      %s201 = smul.addr %s200, 2
      %s202 = scalar_lea.vmem %s0, %s201
      %p203 = pneg %p38
      %p204 = pneg %p35
      %p205 = pneg %p59
      %p206 = pneg %p56
      %p207 = pneg %p80
      %p208 = pneg %p77
      %p209 = pneg %p106
      %p210 = pneg %p103
      %p211 = scmp.lt.s32.totalorder %s17, 1
      %s212 = scalar_select %p211, %s17, 1
      %s213 = smul.addr %s212, 2
      %s214 = smul.addr %s213, 8
      %s215 = scalar_lea.vmem %s3, %s214
      %p216 = pneg %p132
      %p217 = pneg %p129
      %p218 = scmp.lt.s32.totalorder %s17, 1
      %s219 = scalar_select %p218, %s17, 1
      %s220 = smul.addr %s219, 8
      %s221 = scalar_lea.vmem %s4, %s220
      %p222 = pneg %p158
      %p223 = pneg %p155
      %p224 = scmp.lt.s32.totalorder %s17, 1
      %s225 = scalar_select %p224, %s17, 1
      %s226 = smul.addr %s225, 8
      %s227 = scalar_lea.vmem %s5, %s226
      %p228 = scmp.lt.s32.totalorder %s17, 1
      %s229 = scalar_select %p228, %s17, 1
      %s230 = smul.addr %s229, 3
      %s231 = smul.addr %s230, 2
      %s232 = scalar_lea.vmem %s0, %s231
      %p233 = scmp.lt.s32.totalorder %s17, 1
      %s234 = scalar_select %p233, %s17, 1
      %s235 = smul.addr %s234, 2
      %s236 = smul.addr %s235, 8
      %s237 = scalar_lea.vmem %s3, %s236
      %p238 = scmp.lt.s32.totalorder %s17, 1
      %s239 = scalar_select %p238, %s17, 1
      %s240 = smul.addr %s239, 8
      %s241 = scalar_lea.vmem %s4, %s240
      %p242 = scmp.lt.s32.totalorder %s17, 1
      %s243 = scalar_select %p242, %s17, 1
      %s244 = smul.addr %s243, 8
      %s245 = scalar_lea.vmem %s5, %s244
      %v247 = vld [vmem:[%s232] sm:$0xf]
      %v248 = vld [vmem:[%s1] sm:$0xf]
      %s249 = scalar_lea.vmem %s1, 4
      %v250 = vld [vmem:[%s249] sm:$0xf]
      %v253 = vunpack.c.l.s4 1983009808
      %v254 = vunpack.c.0.s8 %v253
      %v255 = vlaneseq
      %v256 = vshrl.u32 %v255, 7
      %v257 = vsub.s32 %v254, %v256
      %v258 = vrot.slane %v247, %v257
      %v259 = vcombine.high %v258, %v258
      %260 = vrot.lane.b32.xlu0 %v258, 127
      %v261 = vpop.permute.xlu0 %260
      %262 = vrot.lane.b32.xlu0 %v259, 127
      %v263 = vpop.permute.xlu0 %262
      %vm264 = vcmask 1039360
      %v265 = vsel %vm264, %v261, %v263
      %vm266 = vcmask 31744
      %v268 = vsel %vm266, %v250, 0
      %vm270 = vcmask 1041408
      %v272 = vsel %vm270, %v265, 0
      %v275 = vsel %vm270, %v263, 0
      %277 = vmatprep.subr.bf16.mxu0 %v275
      %278 = vmatpush1.bf16.msra.mxu0 %v272
      %279 = vmatprep.subr.bf16.mxu0 0
      %280 = vmatpush1.bf16.msra.mxu0 0
      %281 = vmatprep.subr.bf16.mxu0 0
      %282 = vmatpush1.bf16.msra.mxu0 0
      %283 = vmatprep.subr.bf16.mxu0 0
      %284 = vmatpush1.bf16.msra.mxu0 0
      %285 = vmatprep.subr.bf16.mxu0 0
      %286 = vmatpush1.bf16.msra.mxu0 0
      %287 = vmatprep.subr.bf16.mxu0 0
      %288 = vmatpush1.bf16.msra.mxu0 0
      %289 = vmatprep.subr.bf16.mxu0 0
      %290 = vmatpush1.bf16.msra.mxu0 0
      %291 = vmatprep.subr.bf16.mxu0 0
      %292 = vmatpush1.bf16.msra.mxu0 0
      %293 = vmatprep.subr.bf16.mxu0 0
      %294 = vmatpush1.bf16.msra.mxu0 0
      %295 = vmatprep.subr.bf16.mxu0 0
      %296 = vmatpush1.bf16.msra.mxu0 0
      %297 = vmatprep.subr.bf16.mxu0 0
      %298 = vmatpush1.bf16.msra.mxu0 0
      %299 = vmatprep.subr.bf16.mxu0 0
      %300 = vmatpush1.bf16.msra.mxu0 0
      %301 = vmatprep.subr.bf16.mxu0 0
      %302 = vmatpush1.bf16.msra.mxu0 0
      %303 = vmatprep.subr.bf16.mxu0 0
      %304 = vmatpush1.bf16.msra.mxu0 0
      %305 = vmatprep.subr.bf16.mxu0 0
      %306 = vmatpush1.bf16.msra.mxu0 0
      %307 = vmatprep.subr.bf16.mxu0 0
      %308 = vmatpush1.bf16.msra.mxu0 0
      %309 = vmatprep.mubr.bf16.mxu0 0
      %310 = vmatmul.mubr.bf16.gmra.mrb[0].mxu0 %v268
      %v311 = vpop.f32.mrb[0].mxu0
      %v312 = vadd.f32 0.0, %v311
      %v313 = vpop.f32.mrb[0].mxu0
      %v314 = vadd.f32 0.0, %v313
      %v315 = vpop.f32.mrb[0].mxu0
      %v316 = vpop.f32.mrb[0].mxu0
      %317 = vdwg.mxu0
      %v319 = vsel %vm266, %v248, 0
      %v322 = vsel %vm270, %v258, 0
      %v325 = vsel %vm270, %v259, 0
      %327 = vmatprep.subr.bf16.mxu0 %v325
      %328 = vmatpush1.bf16.msra.mxu0 %v322
      %329 = vmatprep.subr.bf16.mxu0 0
      %330 = vmatpush1.bf16.msra.mxu0 0
      %331 = vmatprep.subr.bf16.mxu0 0
      %332 = vmatpush1.bf16.msra.mxu0 0
      %333 = vmatprep.subr.bf16.mxu0 0
      %334 = vmatpush1.bf16.msra.mxu0 0
      %335 = vmatprep.subr.bf16.mxu0 0
      %336 = vmatpush1.bf16.msra.mxu0 0
      %337 = vmatprep.subr.bf16.mxu0 0
      %338 = vmatpush1.bf16.msra.mxu0 0
      %339 = vmatprep.subr.bf16.mxu0 0
      %340 = vmatpush1.bf16.msra.mxu0 0
      %341 = vmatprep.subr.bf16.mxu0 0
      %342 = vmatpush1.bf16.msra.mxu0 0
      %343 = vmatprep.subr.bf16.mxu0 0
      %344 = vmatpush1.bf16.msra.mxu0 0
      %345 = vmatprep.subr.bf16.mxu0 0
      %346 = vmatpush1.bf16.msra.mxu0 0
      %347 = vmatprep.subr.bf16.mxu0 0
      %348 = vmatpush1.bf16.msra.mxu0 0
      %349 = vmatprep.subr.bf16.mxu0 0
      %350 = vmatpush1.bf16.msra.mxu0 0
      %351 = vmatprep.subr.bf16.mxu0 0
      %352 = vmatpush1.bf16.msra.mxu0 0
      %353 = vmatprep.subr.bf16.mxu0 0
      %354 = vmatpush1.bf16.msra.mxu0 0
      %355 = vmatprep.subr.bf16.mxu0 0
      %356 = vmatpush1.bf16.msra.mxu0 0
      %357 = vmatprep.subr.bf16.mxu0 0
      %358 = vmatpush1.bf16.msra.mxu0 0
      %359 = vmatprep.mubr.bf16.mxu0 0
      %360 = vmatmul.mubr.bf16.gmra.mrb[0].mxu0 %v319
      %v361 = vpop.f32.mrb[0].mxu0
      %v362 = vadd.f32 %v312, %v361
      %v363 = vpop.f32.mrb[0].mxu0
      %v364 = vadd.f32 %v314, %v363
      %v365 = vpop.f32.mrb[0].mxu0
      %v366 = vpop.f32.mrb[0].mxu0
      %367 = vdwg.mxu0
      %v368 = vld [vmem:[%s232] sm:$0xf]
      %s369 = scalar_lea.vmem %s1, 8
      %v370 = vld [vmem:[%s369] sm:$0xf]
      %v373 = vunpack.c.l.s4 1983009808
      %v374 = vunpack.c.0.s8 %v373
      %v375 = vlaneseq
      %v376 = vshrl.u32 %v375, 7
      %v377 = vsub.s32 %v374, %v376
      %v378 = vrot.slane %v368, %v377
      %v379 = vcombine.high %v378, %v378
      %380 = vrot.lane.b32.xlu0 %v378, 126
      %v381 = vpop.permute.xlu0 %380
      %382 = vrot.lane.b32.xlu0 %v379, 126
      %v383 = vpop.permute.xlu0 %382
      %vm384 = vcmask 1031168
      %v385 = vsel %vm384, %v381, %v383
      %v387 = vsel %vm266, %v370, 0
      %v390 = vsel %vm270, %v385, 0
      %v393 = vsel %vm270, %v383, 0
      %395 = vmatprep.subr.bf16.mxu0 %v393
      %396 = vmatpush1.bf16.msra.mxu0 %v390
      %397 = vmatprep.subr.bf16.mxu0 0
      %398 = vmatpush1.bf16.msra.mxu0 0
      %399 = vmatprep.subr.bf16.mxu0 0
      %400 = vmatpush1.bf16.msra.mxu0 0
      %401 = vmatprep.subr.bf16.mxu0 0
      %402 = vmatpush1.bf16.msra.mxu0 0
      %403 = vmatprep.subr.bf16.mxu0 0
      %404 = vmatpush1.bf16.msra.mxu0 0
      %405 = vmatprep.subr.bf16.mxu0 0
      %406 = vmatpush1.bf16.msra.mxu0 0
      %407 = vmatprep.subr.bf16.mxu0 0
      %408 = vmatpush1.bf16.msra.mxu0 0
      %409 = vmatprep.subr.bf16.mxu0 0
      %410 = vmatpush1.bf16.msra.mxu0 0
      %411 = vmatprep.subr.bf16.mxu0 0
      %412 = vmatpush1.bf16.msra.mxu0 0
      %413 = vmatprep.subr.bf16.mxu0 0
      %414 = vmatpush1.bf16.msra.mxu0 0
      %415 = vmatprep.subr.bf16.mxu0 0
      %416 = vmatpush1.bf16.msra.mxu0 0
      %417 = vmatprep.subr.bf16.mxu0 0
      %418 = vmatpush1.bf16.msra.mxu0 0
      %419 = vmatprep.subr.bf16.mxu0 0
      %420 = vmatpush1.bf16.msra.mxu0 0
      %421 = vmatprep.subr.bf16.mxu0 0
      %422 = vmatpush1.bf16.msra.mxu0 0
      %423 = vmatprep.subr.bf16.mxu0 0
      %424 = vmatpush1.bf16.msra.mxu0 0
      %425 = vmatprep.subr.bf16.mxu0 0
      %426 = vmatpush1.bf16.msra.mxu0 0
      %427 = vmatprep.mubr.bf16.mxu0 0
      %428 = vmatmul.mubr.bf16.gmra.mrb[0].mxu0 %v387
      %v429 = vpop.f32.mrb[0].mxu0
      %v430 = vadd.f32 0.0, %v429
      %v431 = vpop.f32.mrb[0].mxu0
      %v432 = vadd.f32 0.0, %v431
      %v433 = vpop.f32.mrb[0].mxu0
      %v434 = vpop.f32.mrb[0].mxu0
      %435 = vdwg.mxu0
      %v436 = vadd.f32 %v362, %v430
      %v437 = vadd.f32 %v364, %v432
      %v438 = vld [vmem:[%s232] sm:$0xf]
      %s439 = scalar_lea.vmem %s1, 12
      %v440 = vld [vmem:[%s439] sm:$0xf]
      %v443 = vunpack.c.l.s4 1983009808
      %v444 = vunpack.c.0.s8 %v443
      %v445 = vlaneseq
      %v446 = vshrl.u32 %v445, 7
      %v447 = vsub.s32 %v444, %v446
      %v448 = vrot.slane %v438, %v447
      %v449 = vcombine.high %v448, %v448
      %450 = vrot.lane.b32.xlu0 %v448, 112
      %v451 = vpop.permute.xlu0 %450
      %452 = vrot.lane.b32.xlu0 %v449, 112
      %v453 = vpop.permute.xlu0 %452
      %vm454 = vcmask 916480
      %v455 = vsel %vm454, %v451, %v453
      %v457 = vsel %vm266, %v440, 0
      %v460 = vsel %vm270, %v455, 0
      %v463 = vsel %vm270, %v453, 0
      %465 = vmatprep.subr.bf16.mxu0 %v463
      %466 = vmatpush1.bf16.msra.mxu0 %v460
      %467 = vmatprep.subr.bf16.mxu0 0
      %468 = vmatpush1.bf16.msra.mxu0 0
      %469 = vmatprep.subr.bf16.mxu0 0
      %470 = vmatpush1.bf16.msra.mxu0 0
      %471 = vmatprep.subr.bf16.mxu0 0
      %472 = vmatpush1.bf16.msra.mxu0 0
      %473 = vmatprep.subr.bf16.mxu0 0
      %474 = vmatpush1.bf16.msra.mxu0 0
      %475 = vmatprep.subr.bf16.mxu0 0
      %476 = vmatpush1.bf16.msra.mxu0 0
      %477 = vmatprep.subr.bf16.mxu0 0
      %478 = vmatpush1.bf16.msra.mxu0 0
      %479 = vmatprep.subr.bf16.mxu0 0
      %480 = vmatpush1.bf16.msra.mxu0 0
      %481 = vmatprep.subr.bf16.mxu0 0
      %482 = vmatpush1.bf16.msra.mxu0 0
      %483 = vmatprep.subr.bf16.mxu0 0
      %484 = vmatpush1.bf16.msra.mxu0 0
      %485 = vmatprep.subr.bf16.mxu0 0
      %486 = vmatpush1.bf16.msra.mxu0 0
      %487 = vmatprep.subr.bf16.mxu0 0
      %488 = vmatpush1.bf16.msra.mxu0 0
      %489 = vmatprep.subr.bf16.mxu0 0
      %490 = vmatpush1.bf16.msra.mxu0 0
      %491 = vmatprep.subr.bf16.mxu0 0
      %492 = vmatpush1.bf16.msra.mxu0 0
      %493 = vmatprep.subr.bf16.mxu0 0
      %494 = vmatpush1.bf16.msra.mxu0 0
      %495 = vmatprep.subr.bf16.mxu0 0
      %496 = vmatpush1.bf16.msra.mxu0 0
      %497 = vmatprep.mubr.bf16.mxu0 0
      %498 = vmatmul.mubr.bf16.gmra.mrb[0].mxu0 %v457
      %v499 = vpop.f32.mrb[0].mxu0
      %v500 = vadd.f32 0.0, %v499
      %v501 = vpop.f32.mrb[0].mxu0
      %v502 = vadd.f32 0.0, %v501
      %v503 = vpop.f32.mrb[0].mxu0
      %v504 = vpop.f32.mrb[0].mxu0
      %505 = vdwg.mxu0
      %v506 = vadd.f32 %v436, %v500
      %v507 = vadd.f32 %v437, %v502
      %v508 = vld [vmem:[%s232] sm:$0xf]
      %s509 = scalar_lea.vmem %s1, 16
      %v510 = vld [vmem:[%s509] sm:$0xf]
      %v513 = vunpack.c.l.s4 1983009808
      %v514 = vunpack.c.0.s8 %v513
      %v515 = vlaneseq
      %v516 = vshrl.u32 %v515, 7
      %v517 = vsub.s32 %v514, %v516
      %v518 = vrot.slane %v508, %v517
      %v519 = vcombine.high %v518, %v518
      %520 = vrot.lane.b32.xlu0 %v518, 111
      %v521 = vpop.permute.xlu0 %520
      %522 = vrot.lane.b32.xlu0 %v519, 111
      %v523 = vpop.permute.xlu0 %522
      %vm524 = vcmask 908288
      %v525 = vsel %vm524, %v521, %v523
      %v527 = vsel %vm266, %v510, 0
      %v530 = vsel %vm270, %v525, 0
      %v533 = vsel %vm270, %v523, 0
      %535 = vmatprep.subr.bf16.mxu0 %v533
      %536 = vmatpush1.bf16.msra.mxu0 %v530
      %537 = vmatprep.subr.bf16.mxu0 0
      %538 = vmatpush1.bf16.msra.mxu0 0
      %539 = vmatprep.subr.bf16.mxu0 0
      %540 = vmatpush1.bf16.msra.mxu0 0
      %541 = vmatprep.subr.bf16.mxu0 0
      %542 = vmatpush1.bf16.msra.mxu0 0
      %543 = vmatprep.subr.bf16.mxu0 0
      %544 = vmatpush1.bf16.msra.mxu0 0
      %545 = vmatprep.subr.bf16.mxu0 0
      %546 = vmatpush1.bf16.msra.mxu0 0
      %547 = vmatprep.subr.bf16.mxu0 0
      %548 = vmatpush1.bf16.msra.mxu0 0
      %549 = vmatprep.subr.bf16.mxu0 0
      %550 = vmatpush1.bf16.msra.mxu0 0
      %551 = vmatprep.subr.bf16.mxu0 0
      %552 = vmatpush1.bf16.msra.mxu0 0
      %553 = vmatprep.subr.bf16.mxu0 0
      %554 = vmatpush1.bf16.msra.mxu0 0
      %555 = vmatprep.subr.bf16.mxu0 0
      %556 = vmatpush1.bf16.msra.mxu0 0
      %557 = vmatprep.subr.bf16.mxu0 0
      %558 = vmatpush1.bf16.msra.mxu0 0
      %559 = vmatprep.subr.bf16.mxu0 0
      %560 = vmatpush1.bf16.msra.mxu0 0
      %561 = vmatprep.subr.bf16.mxu0 0
      %562 = vmatpush1.bf16.msra.mxu0 0
      %563 = vmatprep.subr.bf16.mxu0 0
      %564 = vmatpush1.bf16.msra.mxu0 0
      %565 = vmatprep.subr.bf16.mxu0 0
      %566 = vmatpush1.bf16.msra.mxu0 0
      %567 = vmatprep.mubr.bf16.mxu0 0
      %568 = vmatmul.mubr.bf16.gmra.mrb[0].mxu0 %v527
      %v569 = vpop.f32.mrb[0].mxu0
      %v570 = vadd.f32 0.0, %v569
      %v571 = vpop.f32.mrb[0].mxu0
      %v572 = vadd.f32 0.0, %v571
      %v573 = vpop.f32.mrb[0].mxu0
      %v574 = vpop.f32.mrb[0].mxu0
      %575 = vdwg.mxu0
      %v576 = vadd.f32 %v506, %v570
      %v577 = vadd.f32 %v507, %v572
      %v578 = vld [vmem:[%s232] sm:$0xf]
      %s579 = scalar_lea.vmem %s1, 20
      %v580 = vld [vmem:[%s579] sm:$0xf]
      %v583 = vunpack.c.l.s4 1983009808
      %v584 = vunpack.c.0.s8 %v583
      %v585 = vlaneseq
      %v586 = vshrl.u32 %v585, 7
      %v587 = vsub.s32 %v584, %v586
      %v588 = vrot.slane %v578, %v587
      %v589 = vcombine.high %v588, %v588
      %590 = vrot.lane.b32.xlu0 %v588, 110
      %v591 = vpop.permute.xlu0 %590
      %592 = vrot.lane.b32.xlu0 %v589, 110
      %v593 = vpop.permute.xlu0 %592
      %vm594 = vcmask 900096
      %v595 = vsel %vm594, %v591, %v593
      %v597 = vsel %vm266, %v580, 0
      %v600 = vsel %vm270, %v595, 0
      %v603 = vsel %vm270, %v593, 0
      %605 = vmatprep.subr.bf16.mxu0 %v603
      %606 = vmatpush1.bf16.msra.mxu0 %v600
      %607 = vmatprep.subr.bf16.mxu0 0
      %608 = vmatpush1.bf16.msra.mxu0 0
      %609 = vmatprep.subr.bf16.mxu0 0
      %610 = vmatpush1.bf16.msra.mxu0 0
      %611 = vmatprep.subr.bf16.mxu0 0
      %612 = vmatpush1.bf16.msra.mxu0 0
      %613 = vmatprep.subr.bf16.mxu0 0
      %614 = vmatpush1.bf16.msra.mxu0 0
      %615 = vmatprep.subr.bf16.mxu0 0
      %616 = vmatpush1.bf16.msra.mxu0 0
      %617 = vmatprep.subr.bf16.mxu0 0
      %618 = vmatpush1.bf16.msra.mxu0 0
      %619 = vmatprep.subr.bf16.mxu0 0
      %620 = vmatpush1.bf16.msra.mxu0 0
      %621 = vmatprep.subr.bf16.mxu0 0
      %622 = vmatpush1.bf16.msra.mxu0 0
      %623 = vmatprep.subr.bf16.mxu0 0
      %624 = vmatpush1.bf16.msra.mxu0 0
      %625 = vmatprep.subr.bf16.mxu0 0
      %626 = vmatpush1.bf16.msra.mxu0 0
      %627 = vmatprep.subr.bf16.mxu0 0
      %628 = vmatpush1.bf16.msra.mxu0 0
      %629 = vmatprep.subr.bf16.mxu0 0
      %630 = vmatpush1.bf16.msra.mxu0 0
      %631 = vmatprep.subr.bf16.mxu0 0
      %632 = vmatpush1.bf16.msra.mxu0 0
      %633 = vmatprep.subr.bf16.mxu0 0
      %634 = vmatpush1.bf16.msra.mxu0 0
      %635 = vmatprep.subr.bf16.mxu0 0
      %636 = vmatpush1.bf16.msra.mxu0 0
      %637 = vmatprep.mubr.bf16.mxu0 0
      %638 = vmatmul.mubr.bf16.gmra.mrb[0].mxu0 %v597
      %v639 = vpop.f32.mrb[0].mxu0
      %v640 = vadd.f32 0.0, %v639
      %v641 = vpop.f32.mrb[0].mxu0
      %v642 = vadd.f32 0.0, %v641
      %v643 = vpop.f32.mrb[0].mxu0
      %v644 = vpop.f32.mrb[0].mxu0
      %645 = vdwg.mxu0
      %v646 = vadd.f32 %v576, %v640
      %v647 = vadd.f32 %v577, %v642
      %v648 = vld [vmem:[%s232] sm:$0xf]
      %s649 = scalar_lea.vmem %s1, 24
      %v650 = vld [vmem:[%s649] sm:$0xf]
      %v653 = vunpack.c.l.s4 1983009808
      %v654 = vunpack.c.0.s8 %v653
      %v655 = vlaneseq
      %v656 = vshrl.u32 %v655, 7
      %v657 = vsub.s32 %v654, %v656
      %v658 = vrot.slane %v648, %v657
      %v659 = vcombine.high %v658, %v658
      %660 = vrot.lane.b32.xlu0 %v658, 96
      %v661 = vpop.permute.xlu0 %660
      %662 = vrot.lane.b32.xlu0 %v659, 96
      %v663 = vpop.permute.xlu0 %662
      %vm664 = vcmask 785408
      %v665 = vsel %vm664, %v661, %v663
      %v667 = vsel %vm266, %v650, 0
      %v670 = vsel %vm270, %v665, 0
      %v673 = vsel %vm270, %v663, 0
      %675 = vmatprep.subr.bf16.mxu0 %v673
      %676 = vmatpush1.bf16.msra.mxu0 %v670
      %677 = vmatprep.subr.bf16.mxu0 0
      %678 = vmatpush1.bf16.msra.mxu0 0
      %679 = vmatprep.subr.bf16.mxu0 0
      %680 = vmatpush1.bf16.msra.mxu0 0
      %681 = vmatprep.subr.bf16.mxu0 0
      %682 = vmatpush1.bf16.msra.mxu0 0
      %683 = vmatprep.subr.bf16.mxu0 0
      %684 = vmatpush1.bf16.msra.mxu0 0
      %685 = vmatprep.subr.bf16.mxu0 0
      %686 = vmatpush1.bf16.msra.mxu0 0
      %687 = vmatprep.subr.bf16.mxu0 0
      %688 = vmatpush1.bf16.msra.mxu0 0
      %689 = vmatprep.subr.bf16.mxu0 0
      %690 = vmatpush1.bf16.msra.mxu0 0
      %691 = vmatprep.subr.bf16.mxu0 0
      %692 = vmatpush1.bf16.msra.mxu0 0
      %693 = vmatprep.subr.bf16.mxu0 0
      %694 = vmatpush1.bf16.msra.mxu0 0
      %695 = vmatprep.subr.bf16.mxu0 0
      %696 = vmatpush1.bf16.msra.mxu0 0
      %697 = vmatprep.subr.bf16.mxu0 0
      %698 = vmatpush1.bf16.msra.mxu0 0
      %699 = vmatprep.subr.bf16.mxu0 0
      %700 = vmatpush1.bf16.msra.mxu0 0
      %701 = vmatprep.subr.bf16.mxu0 0
      %702 = vmatpush1.bf16.msra.mxu0 0
      %703 = vmatprep.subr.bf16.mxu0 0
      %704 = vmatpush1.bf16.msra.mxu0 0
      %705 = vmatprep.subr.bf16.mxu0 0
      %706 = vmatpush1.bf16.msra.mxu0 0
      %707 = vmatprep.mubr.bf16.mxu0 0
      %708 = vmatmul.mubr.bf16.gmra.mrb[0].mxu0 %v667
      %v709 = vpop.f32.mrb[0].mxu0
      %v710 = vadd.f32 0.0, %v709
      %v711 = vpop.f32.mrb[0].mxu0
      %v712 = vadd.f32 0.0, %v711
      %v713 = vpop.f32.mrb[0].mxu0
      %v714 = vpop.f32.mrb[0].mxu0
      %715 = vdwg.mxu0
      %v716 = vadd.f32 %v646, %v710
      %v717 = vadd.f32 %v647, %v712
      %v718 = vld [vmem:[%s232] sm:$0x3f]
      %s719 = scalar_lea.vmem %s1, 28
      %v720 = vld [vmem:[%s719] sm:$0xf]
      %v722 = vcombine.high %v718, %v718
      %v724 = vunpack.c.l.s4 1983009808
      %v725 = vunpack.c.0.s8 %v724
      %v726 = vlaneseq
      %v727 = vshrl.u32 %v726, 7
      %v728 = vsub.s32 %v725, %v727
      %v729 = vrot.slane %v718, %v728
      %v731 = vunpack.c.l.s4 1983009808
      %v732 = vunpack.c.0.s8 %v731
      %v733 = vlaneseq
      %v734 = vshrl.u32 %v733, 7
      %v735 = vsub.s32 %v732, %v734
      %v736 = vrot.slane %v722, %v735
      %v737 = vcombine.high %v729, %v729
      %738 = vrot.lane.b32.xlu0 %v729, 95
      %v739 = vpop.permute.xlu0 %738
      %740 = vrot.lane.b32.xlu0 %v737, 95
      %v741 = vpop.permute.xlu0 %740
      %742 = vrot.lane.b32.xlu0 %v736, 95
      %v743 = vpop.permute.xlu0 %742
      %vm744 = vcmask 777216
      %v745 = vsel %vm744, %v739, %v741
      %v746 = vsel %vm744, %v741, %v743
      %v748 = vsel %vm266, %v720, 0
      %v751 = vsel %vm270, %v745, 0
      %v754 = vsel %vm270, %v746, 0
      %756 = vmatprep.subr.bf16.mxu0 %v754
      %757 = vmatpush1.bf16.msra.mxu0 %v751
      %758 = vmatprep.subr.bf16.mxu0 0
      %759 = vmatpush1.bf16.msra.mxu0 0
      %760 = vmatprep.subr.bf16.mxu0 0
      %761 = vmatpush1.bf16.msra.mxu0 0
      %762 = vmatprep.subr.bf16.mxu0 0
      %763 = vmatpush1.bf16.msra.mxu0 0
      %764 = vmatprep.subr.bf16.mxu0 0
      %765 = vmatpush1.bf16.msra.mxu0 0
      %766 = vmatprep.subr.bf16.mxu0 0
      %767 = vmatpush1.bf16.msra.mxu0 0
      %768 = vmatprep.subr.bf16.mxu0 0
      %769 = vmatpush1.bf16.msra.mxu0 0
      %770 = vmatprep.subr.bf16.mxu0 0
      %771 = vmatpush1.bf16.msra.mxu0 0
      %772 = vmatprep.subr.bf16.mxu0 0
      %773 = vmatpush1.bf16.msra.mxu0 0
      %774 = vmatprep.subr.bf16.mxu0 0
      %775 = vmatpush1.bf16.msra.mxu0 0
      %776 = vmatprep.subr.bf16.mxu0 0
      %777 = vmatpush1.bf16.msra.mxu0 0
      %778 = vmatprep.subr.bf16.mxu0 0
      %779 = vmatpush1.bf16.msra.mxu0 0
      %780 = vmatprep.subr.bf16.mxu0 0
      %781 = vmatpush1.bf16.msra.mxu0 0
      %782 = vmatprep.subr.bf16.mxu0 0
      %783 = vmatpush1.bf16.msra.mxu0 0
      %784 = vmatprep.subr.bf16.mxu0 0
      %785 = vmatpush1.bf16.msra.mxu0 0
      %786 = vmatprep.subr.bf16.mxu0 0
      %787 = vmatpush1.bf16.msra.mxu0 0
      %788 = vmatprep.mubr.bf16.mxu0 0
      %789 = vmatmul.mubr.bf16.gmra.mrb[0].mxu0 %v748
      %v790 = vpop.f32.mrb[0].mxu0
      %v791 = vadd.f32 0.0, %v790
      %v792 = vpop.f32.mrb[0].mxu0
      %v793 = vadd.f32 0.0, %v792
      %v794 = vpop.f32.mrb[0].mxu0
      %v795 = vpop.f32.mrb[0].mxu0
      %796 = vdwg.mxu0
      %v797 = vadd.f32 %v716, %v791
      %v798 = vadd.f32 %v717, %v793
      %v799 = vld [vmem:[%s232] sm:$0x3f]
      %s800 = scalar_lea.vmem %s1, 32
      %v801 = vld [vmem:[%s800] sm:$0xf]
      %v803 = vcombine.high %v799, %v799
      %v805 = vunpack.c.l.s4 1983009808
      %v806 = vunpack.c.0.s8 %v805
      %v807 = vlaneseq
      %v808 = vshrl.u32 %v807, 7
      %v809 = vsub.s32 %v806, %v808
      %v810 = vrot.slane %v799, %v809
      %v812 = vunpack.c.l.s4 1983009808
      %v813 = vunpack.c.0.s8 %v812
      %v814 = vlaneseq
      %v815 = vshrl.u32 %v814, 7
      %v816 = vsub.s32 %v813, %v815
      %v817 = vrot.slane %v803, %v816
      %v818 = vcombine.high %v810, %v810
      %819 = vrot.lane.b32.xlu0 %v810, 94
      %v820 = vpop.permute.xlu0 %819
      %821 = vrot.lane.b32.xlu0 %v818, 94
      %v822 = vpop.permute.xlu0 %821
      %823 = vrot.lane.b32.xlu0 %v817, 94
      %v824 = vpop.permute.xlu0 %823
      %vm825 = vcmask 769024
      %v826 = vsel %vm825, %v820, %v822
      %v827 = vsel %vm825, %v822, %v824
      %v829 = vsel %vm266, %v801, 0
      %v832 = vsel %vm270, %v826, 0
      %v835 = vsel %vm270, %v827, 0
      %837 = vmatprep.subr.bf16.mxu0 %v835
      %838 = vmatpush1.bf16.msra.mxu0 %v832
      %839 = vmatprep.subr.bf16.mxu0 0
      %840 = vmatpush1.bf16.msra.mxu0 0
      %841 = vmatprep.subr.bf16.mxu0 0
      %842 = vmatpush1.bf16.msra.mxu0 0
      %843 = vmatprep.subr.bf16.mxu0 0
      %844 = vmatpush1.bf16.msra.mxu0 0
      %845 = vmatprep.subr.bf16.mxu0 0
      %846 = vmatpush1.bf16.msra.mxu0 0
      %847 = vmatprep.subr.bf16.mxu0 0
      %848 = vmatpush1.bf16.msra.mxu0 0
      %849 = vmatprep.subr.bf16.mxu0 0
      %850 = vmatpush1.bf16.msra.mxu0 0
      %851 = vmatprep.subr.bf16.mxu0 0
      %852 = vmatpush1.bf16.msra.mxu0 0
      %853 = vmatprep.subr.bf16.mxu0 0
      %854 = vmatpush1.bf16.msra.mxu0 0
      %855 = vmatprep.subr.bf16.mxu0 0
      %856 = vmatpush1.bf16.msra.mxu0 0
      %857 = vmatprep.subr.bf16.mxu0 0
      %858 = vmatpush1.bf16.msra.mxu0 0
      %859 = vmatprep.subr.bf16.mxu0 0
      %860 = vmatpush1.bf16.msra.mxu0 0
      %861 = vmatprep.subr.bf16.mxu0 0
      %862 = vmatpush1.bf16.msra.mxu0 0
      %863 = vmatprep.subr.bf16.mxu0 0
      %864 = vmatpush1.bf16.msra.mxu0 0
      %865 = vmatprep.subr.bf16.mxu0 0
      %866 = vmatpush1.bf16.msra.mxu0 0
      %867 = vmatprep.subr.bf16.mxu0 0
      %868 = vmatpush1.bf16.msra.mxu0 0
      %869 = vmatprep.mubr.bf16.mxu0 0
      %870 = vmatmul.mubr.bf16.gmra.mrb[0].mxu0 %v829
      %v871 = vpop.f32.mrb[0].mxu0
      %v872 = vadd.f32 0.0, %v871
      %v873 = vpop.f32.mrb[0].mxu0
      %v874 = vadd.f32 0.0, %v873
      %v875 = vpop.f32.mrb[0].mxu0
      %v876 = vpop.f32.mrb[0].mxu0
      %877 = vdwg.mxu0
      %v878 = vadd.f32 %v797, %v872
      %v879 = vadd.f32 %v798, %v874
      %880 = vst [vmem:[%s237] sm:$0xff] %v878
      %vm881 = vcmask 785408
      %882 = vst.msk [vmem:[%s237 + $0x8] sm:$0xff] %vm881, %v879
      %v883 = vld [vmem:[%s2] sm:$0x3]
      %v885 = vlaneseq
      %v886 = vshrl.u32 %v885, 7
      %v887 = vsub.s32 0, %v886
      %v888 = vrot.slane %v883, %v887
      %v889 = vlaneseq
      %v890 = vshrl.u32 %v889, 7
      %v891 = vsub.s32 1, %v890
      %v892 = vrot.slane %v883, %v891
      %v895 = vmul.f32 %v878, %v888
      %v896 = vmul.f32 %v879, %v892
      %v897 = vsel %vm881, %v896, 0.0
      %v898 = vadd.f32 %v895, %v897
      %899 = vadd.xlane.f32.xlu0 %v898
      %v900 = vpop.xlane.xlu0 %899
      %v901 = vmul.f32 %v900, 0.0051020407
      %v902 = vsub.f32 %v878, %v901
      %v903 = vsub.f32 %v879, %v901
      %v904 = vmul.f32 %v902, %v888
      %v905 = vmul.f32 %v903, %v892
      %vm906 = vcmask 7168
      %907 = vst.msk [vmem:[%s241] sm:$0xff] %vm906, %v901
      %v908 = vmul.f32 %v904, %v904
      %v909 = vmul.f32 %v905, %v905
      %v910 = vsel %vm881, %v909, 0.0
      %v911 = vadd.f32 %v908, %v910
      %912 = vadd.xlane.f32.xlu0 %v911
      %v913 = vpop.xlane.xlu0 %912
      %914 = vst.msk [vmem:[%s245] sm:$0xff] %vm906, %v913
      %p915 = scmp.lt.s32.totalorder %s17, 1
      %s916 = scalar_select %p915, %s17, 1
      %s917 = smul.addr %s916, 2
      %s918 = smul.addr %s917, 8
      %s919 = scalar_lea.vmem %s3, %s918
      %p920 = scmp.lt.s32.totalorder %s17, 1
      %s921 = scalar_select %p920, %s17, 1
      %s922 = smul.addr %s921, 8
      %s923 = scalar_lea.vmem %s4, %s922
      %p924 = scmp.lt.s32.totalorder %s17, 1
      %s925 = scalar_select %p924, %s17, 1
      %s926 = smul.addr %s925, 8
      %s927 = scalar_lea.vmem %s5, %s926
      // Predicated region
      $region33: #{conv_layer_forward.2} parent=31 // pred_check
        %p928 = pneg %p103
      $region34: #{conv_layer_forward.2} parent=31 // pred_check_branch
        %930 = sbr.rel (%p928) target = $region36
      $region35: #{conv_layer_forward.2} parent=31 // pred_region
        _
      $region36: #{conv_layer_forward.2} parent=31 // pred_fallthru
        _
      // Predicated region
      $region37: #{conv_layer_forward.2} parent=31 // pred_check
        %p931 = pneg %p129
      $region38: #{conv_layer_forward.2} parent=31 // pred_check_branch
        %933 = sbr.rel (%p931) target = $region40
      $region39: #{conv_layer_forward.2} parent=31 // pred_region
        _
      $region40: #{conv_layer_forward.2} parent=31 // pred_fallthru
        _
      // Predicated region
      $region41: #{conv_layer_forward.2} parent=31 // pred_check
        %p934 = pneg %p155
      $region42: #{conv_layer_forward.2} parent=31 // pred_check_branch
        %936 = sbr.rel (%p934) target = $region44
      $region43: #{conv_layer_forward.2} parent=31 // pred_region
        _
      $region44: #{conv_layer_forward.2} parent=31 // pred_fallthru
        _
    $region32: #{conv_layer_forward.2} parent=5 // pred_fallthru
      _
    %p937 = scmp.le.s32.totalorder 2, %s12
    // Predicated region
    $region45: #{conv_layer_forward.2} parent=5 // pred_check
      %p938 = pneg %p937
    $region46: #{conv_layer_forward.2} parent=5 // pred_check_branch
      %940 = sbr.rel (%p938) target = $region48
    $region47: #{conv_layer_forward.2} parent=5 // pred_region
      %s941 = ssub.s32 %s12, 2
      // Predicated region
      $region49: #{conv_layer_forward.2} parent=47 // pred_check
        %p942 = pneg %p109
      $region50: #{conv_layer_forward.2} parent=47 // pred_check_branch
        %944 = sbr.rel (%p942) target = $region52
      $region51: #{conv_layer_forward.2} parent=47 // pred_region
        %p945 = scmp.lt.s32.totalorder %s18, 1
        %s946 = scalar_select %p945, %s18, 1
        %s947 = smul.addr %s946, 2
        %s948 = smul.addr %s947, 8
        %s949 = scalar_lea.vmem %s3, %s948
      $region52: #{conv_layer_forward.2} parent=47 // pred_fallthru
        _
      // Predicated region
      $region53: #{conv_layer_forward.2} parent=47 // pred_check
        %p950 = pneg %p135
      $region54: #{conv_layer_forward.2} parent=47 // pred_check_branch
        %952 = sbr.rel (%p950) target = $region56
      $region55: #{conv_layer_forward.2} parent=47 // pred_region
        %p953 = scmp.lt.s32.totalorder %s18, 1
        %s954 = scalar_select %p953, %s18, 1
        %s955 = smul.addr %s954, 8
        %s956 = scalar_lea.vmem %s4, %s955
      $region56: #{conv_layer_forward.2} parent=47 // pred_fallthru
        _
      // Predicated region
      $region57: #{conv_layer_forward.2} parent=47 // pred_check
        %p957 = pneg %p161
      $region58: #{conv_layer_forward.2} parent=47 // pred_check_branch
        %959 = sbr.rel (%p957) target = $region60
      $region59: #{conv_layer_forward.2} parent=47 // pred_region
        %p960 = scmp.lt.s32.totalorder %s18, 1
        %s961 = scalar_select %p960, %s18, 1
        %s962 = smul.addr %s961, 8
        %s963 = scalar_lea.vmem %s5, %s962
      $region60: #{conv_layer_forward.2} parent=47 // pred_fallthru
        _
    $region48: #{conv_layer_forward.2} parent=5 // pred_fallthru
      _
  $region6: #{conv_layer_forward.2} parent=0 // loop_footer
    %s16 = sadd.s32 1, %s12
  $region7: #{conv_layer_forward.2} parent=0 // loop_footer_branch
    %11 = sbr.rel target = $region3
  $region8: #{conv_layer_forward.2} parent=0 // loop_exit
    _

</llo_original>
